<compile_context>
chip_gen: v6e
topology: v6e:2x2x1
jax: 0.10.0
libtpu: 0.0.40
codegen_flags: <defaults>
</compile_context>

<pallas_src>
import numpy as np
import jax
import jax.numpy as jnp
from jax import lax
from jax.experimental import pallas as pl
from jax.experimental.pallas import tpu as pltpu


# ----------------------------------------------------------------------------
# Fused kernel: maxpool2 -> conv3x3(BN folded)+ReLU -> SGE -> conv3x3(BN folded)+ReLU
# ----------------------------------------------------------------------------

def down_sge_kernel(x_ref, wc1_ref, bc1_ref, gm_ref, gmt_ref, sgw_ref, sgb_ref,
                    wc2_ref, bc2_ref, o_ref, p1_ref, p2_ref):
    # x_ref : (1, Ho, 2, Wo, 2*Cin)   pooling pairs exposed by a free wrapper reshape
    # wc1   : (9*Cin, Cmid)  im2col conv1 weights, BN scale folded in
    # bc1   : (1, Cmid)      folded BN bias
    # gm    : (Cmid, G)      0/1 channel->group membership
    # gmt   : (G, Cmid)      its transpose (group->channel broadcast)
    # sgw/sgb: (1, G)        SGE per-group affine
    # wc2   : (9*Cmid, Cout), bc2: (1, Cout)
    # o_ref : (1, Ho*Wo, Cout)
    # p1/p2 : VMEM scratch, zero-padded conv inputs (Ho+2, Wo+2, Cin/Cmid)
    _, Ho, _, Wo, two_cin = x_ref.shape
    Cin = two_cin // 2
    Cmid = wc1_ref.shape[1]
    P = Ho * Wo

    # ---- MaxPool2d(2): pairwise max over the 2x2 window -------------------------------
    row_max = jnp.maximum(x_ref[0, :, 0, :, :], x_ref[0, :, 1, :, :])      # (Ho, Wo, 2*Cin)
    pool = jnp.maximum(row_max[:, :, :Cin], row_max[:, :, Cin:])           # (Ho, Wo, Cin)

    # ---- conv1: 3x3 'SAME', BN folded, ReLU (single im2col matmul, K=9*Cin) ------------
    p1_ref[...] = jnp.zeros_like(p1_ref)
    p1_ref[1:Ho + 1, 1:Wo + 1, :] = pool
    taps1 = [p1_ref[dy:dy + Ho, dx:dx + Wo, :] for dy in range(3) for dx in range(3)]
    patches1 = jnp.concatenate(taps1, axis=-1).reshape(P, 9 * Cin)
    h1 = jnp.dot(patches1, wc1_ref[...], preferred_element_type=jnp.float32) + bc1_ref[...]
    h1 = jnp.maximum(h1, 0.0)                                              # (P, Cmid)

    # ---- SpatialGroupEnhance (group sums / broadcasts as 0/1-mask matmuls) -------------
    avg = jnp.mean(h1, axis=0, keepdims=True)                              # (1, Cmid)
    xn = h1 * avg
    t = jnp.dot(xn, gm_ref[...], preferred_element_type=jnp.float32)       # (P, G)
    tc = t - jnp.mean(t, axis=0, keepdims=True)
    var = jnp.sum(tc * tc, axis=0, keepdims=True) / (P - 1)                # unbiased (torch .std)
    tn = tc / (jnp.sqrt(var) + 1e-5)
    tn = tn * sgw_ref[...] + sgb_ref[...]
    gate = jnp.dot(jax.nn.sigmoid(tn), gmt_ref[...],
                   preferred_element_type=jnp.float32)                     # (P, Cmid)
    a = h1 * gate

    # ---- conv2: 3x3 'SAME', BN folded, ReLU --------------------------------------------
    p2_ref[...] = jnp.zeros_like(p2_ref)
    p2_ref[1:Ho + 1, 1:Wo + 1, :] = a.reshape(Ho, Wo, Cmid)
    taps2 = [p2_ref[dy:dy + Ho, dx:dx + Wo, :] for dy in range(3) for dx in range(3)]
    patches2 = jnp.concatenate(taps2, axis=-1).reshape(P, 9 * Cmid)
    y = jnp.dot(patches2, wc2_ref[...], preferred_element_type=jnp.float32) + bc2_ref[...]
    o_ref[0] = jnp.maximum(y, 0.0).astype(o_ref.dtype)


# ----------------------------------------------------------------------------
# Wrapper
# ----------------------------------------------------------------------------

def _fold_conv_bn(w_hwio, bn, eps=1e-5):
    """Fold eval-mode BN into the conv weight; return (im2col weight, bias row)."""
    scale = bn['gamma'] / jnp.sqrt(bn['var'] + eps)
    bias = bn['beta'] - bn['mean'] * scale
    wf = (w_hwio * scale[None, None, None, :]).reshape(-1, w_hwio.shape[-1])
    return wf.astype(jnp.float32), bias.reshape(1, -1).astype(jnp.float32)


def down_attention_sge(x_nchw, p, groups):
    x = jnp.transpose(x_nchw, (0, 2, 3, 1))            # NCHW -> NHWC (lanes = channels)
    N, H, W, Cin = x.shape
    Ho, Wo = H // 2, W // 2
    P = Ho * Wo

    # Free (contiguity-preserving) reshape exposing the 2x2 pooling pairs — no pad/transpose HLO.
    xr = x.reshape(N, Ho, 2, Wo, 2 * Cin)

    wc1, bc1 = _fold_conv_bn(p['w1'], p['bn1'])
    wc2, bc2 = _fold_conv_bn(p['w2'], p['bn2'])
    Cmid, Cout = wc1.shape[1], wc2.shape[1]
    assert Cmid % groups == 0
    Cg = Cmid // groups

    gmask = (jnp.arange(Cmid)[:, None] // Cg ==
             jnp.arange(groups)[None, :]).astype(jnp.float32)              # (Cmid, G)
    gmask_t = gmask.T                                                      # (G, Cmid)
    sgw = p['sge_w'].reshape(1, groups).astype(jnp.float32)
    sgb = p['sge_b'].reshape(1, groups).astype(jnp.float32)

    out = pl.pallas_call(
        down_sge_kernel,
        out_shape=jax.ShapeDtypeStruct((N, P, Cout), x.dtype),
        grid=(N,),
        in_specs=[
            pl.BlockSpec((1, Ho, 2, Wo, 2 * Cin), lambda n: (n, 0, 0, 0, 0)),
            pl.BlockSpec((9 * Cin, Cmid), lambda n: (0, 0)),
            pl.BlockSpec((1, Cmid), lambda n: (0, 0)),
            pl.BlockSpec((Cmid, groups), lambda n: (0, 0)),
            pl.BlockSpec((groups, Cmid), lambda n: (0, 0)),
            pl.BlockSpec((1, groups), lambda n: (0, 0)),
            pl.BlockSpec((1, groups), lambda n: (0, 0)),
            pl.BlockSpec((9 * Cmid, Cout), lambda n: (0, 0)),
            pl.BlockSpec((1, Cout), lambda n: (0, 0)),
        ],
        out_specs=pl.BlockSpec((1, P, Cout), lambda n: (n, 0, 0)),
        scratch_shapes=[
            pltpu.VMEM((Ho + 2, Wo + 2, Cin), jnp.float32),
            pltpu.VMEM((Ho + 2, Wo + 2, Cmid), jnp.float32),
        ],
        compiler_params=pltpu.CompilerParams(dimension_semantics=("parallel",)),
    )(xr, wc1, bc1, gmask, gmask_t, sgw, sgb, wc2, bc2)

    out = out.reshape(N, Ho, Wo, Cout)                  # free reshape
    return jnp.transpose(out, (0, 3, 1, 2))             # back to NCHW


# ----------------------------------------------------------------------------
# Parameter construction (deterministic, synthetic) & pure-JAX reference
# ----------------------------------------------------------------------------

class _KeyGen:
    def __init__(self, key):
        self._key = key

    def __call__(self):
        self._key, sub = jax.random.split(self._key)
        return sub


def make_params(in_channels, out_channels, groups, key):
    mid = out_channels   # DoubleConvAttentionSGE default: mid_channels = out_channels
    kg = _KeyGen(key)

    def nrm(shape, s=0.2):
        return (s * jax.random.normal(kg(), shape)).astype(jnp.float32)

    def bn(c):
        return dict(gamma=1.0 + nrm((c,), 0.1), beta=nrm((c,), 0.1),
                    mean=nrm((c,), 0.05), var=0.5 + jnp.abs(nrm((c,), 0.2)))

    return dict(
        w1=nrm((3, 3, in_channels, mid)),        # conv1 3x3, bias=False (HWIO)
        bn1=bn(mid),
        sge_w=nrm((groups,), 0.5),               # torch init is zeros; random for a meaningful test
        sge_b=1.0 + nrm((groups,), 0.2),
        w2=nrm((3, 3, mid, out_channels)),       # conv2 3x3, bias=False (HWIO)
        bn2=bn(out_channels),
    )


def ref_forward(x_nchw, p, groups, eps=1e-5):
    x = jnp.transpose(x_nchw, (0, 2, 3, 1))
    N, H, W, Cin = x.shape
    pool = x.reshape(N, H // 2, 2, W // 2, 2, Cin).max(axis=(2, 4))

    def conv_bn_relu(h, w, bn):
        y = lax.conv_general_dilated(h, w, (1, 1), 'SAME',
                                     dimension_numbers=('NHWC', 'HWIO', 'NHWC'))
        s = bn['gamma'] / jnp.sqrt(bn['var'] + eps)
        return jnp.maximum(y * s + (bn['beta'] - bn['mean'] * s), 0.0)

    h1 = conv_bn_relu(pool, p['w1'], p['bn1'])

    Nn, Ho, Wo, C = h1.shape
    Cg = C // groups
    xg = h1.reshape(Nn, Ho, Wo, groups, Cg)
    avg = xg.mean(axis=(1, 2), keepdims=True)
    t = (xg * avg).sum(axis=-1)                                        # (N, Ho, Wo, G)
    tc = t - t.mean(axis=(1, 2), keepdims=True)
    var = jnp.sum(tc * tc, axis=(1, 2), keepdims=True) / (Ho * Wo - 1)
    tn = tc / (jnp.sqrt(var) + 1e-5)
    tn = tn * p['sge_w'].reshape(1, 1, 1, groups) + p['sge_b'].reshape(1, 1, 1, groups)
    a = (xg * jax.nn.sigmoid(tn)[..., None]).reshape(Nn, Ho, Wo, C)

    y = conv_bn_relu(a, p['w2'], p['bn2'])
    return jnp.transpose(y, (0, 3, 1, 2))


# ----------------------------------------------------------------------------

if __name__ == "__main__":
    key = jax.random.PRNGKey(0)
    k_x, k_p = jax.random.split(key)

    in_channels, out_channels, groups = 4, 8, 4
    x_nchw = jax.random.normal(k_x, (2, in_channels, 16, 16), jnp.float32)

    params = make_params(in_channels, out_channels, groups, k_p)

    out = down_attention_sge(x_nchw, params, groups)
    jax.block_until_ready(out)

    ref = ref_forward(x_nchw, params, groups)
    np.testing.assert_allclose(np.asarray(out), np.asarray(ref), rtol=1e-3, atol=1e-3)

    assert out.shape == (2, out_channels, 8, 8)
    print("KERNEL_OK")
</pallas_src>

<mosaic_0001>
module attributes {stable_mosaic.version = 11 : i64} {
  func.func @down_sge_kernel(%arg0: i32, %arg1: memref<1x8x2x8x8xf32, #tpu.memory_space<vmem>>, %arg2: memref<36x8xf32, #tpu.memory_space<vmem>>, %arg3: memref<1x8xf32, #tpu.memory_space<vmem>>, %arg4: memref<8x4xf32, #tpu.memory_space<vmem>>, %arg5: memref<4x8xf32, #tpu.memory_space<vmem>>, %arg6: memref<1x4xf32, #tpu.memory_space<vmem>>, %arg7: memref<1x4xf32, #tpu.memory_space<vmem>>, %arg8: memref<72x8xf32, #tpu.memory_space<vmem>>, %arg9: memref<1x8xf32, #tpu.memory_space<vmem>>, %arg10: memref<1x64x8xf32, #tpu.memory_space<vmem>>, %arg11: memref<10x10x4xf32, #tpu.memory_space<vmem>>, %arg12: memref<10x10x8xf32, #tpu.memory_space<vmem>>) attributes {dimension_semantics = [#tpu.dimension_semantics<parallel>], iteration_bounds = array<i64: 2>, scalar_prefetch = 0 : i64, scratch_operands = 2 : i64, tpu.core_type = #tpu.core_type<tc>, window_params = [{transform_indices = @transform_0, window_bounds = array<i64: 1, 8, 2, 8, 8>}, {pipeline_mode = #tpu.pipeline_mode<synchronous>, transform_indices = @transform_1, window_bounds = array<i64: 36, 8>}, {pipeline_mode = #tpu.pipeline_mode<synchronous>, transform_indices = @transform_2, window_bounds = array<i64: 1, 8>}, {pipeline_mode = #tpu.pipeline_mode<synchronous>, transform_indices = @transform_3, window_bounds = array<i64: 8, 4>}, {pipeline_mode = #tpu.pipeline_mode<synchronous>, transform_indices = @transform_4, window_bounds = array<i64: 4, 8>}, {pipeline_mode = #tpu.pipeline_mode<synchronous>, transform_indices = @transform_5, window_bounds = array<i64: 1, 4>}, {pipeline_mode = #tpu.pipeline_mode<synchronous>, transform_indices = @transform_6, window_bounds = array<i64: 1, 4>}, {pipeline_mode = #tpu.pipeline_mode<synchronous>, transform_indices = @transform_7, window_bounds = array<i64: 72, 8>}, {pipeline_mode = #tpu.pipeline_mode<synchronous>, transform_indices = @transform_8, window_bounds = array<i64: 1, 8>}, {transform_indices = @transform_9, window_bounds = array<i64: 1, 64, 8>}]} {
    %c0 = arith.constant 0 : index
    %c0_0 = arith.constant 0 : index
    %c0_1 = arith.constant 0 : index
    %c0_2 = arith.constant 0 : index
    %c0_3 = arith.constant 0 : index
    %0 = vector.load %arg1[%c0, %c0_0, %c0_1, %c0_2, %c0_3] : memref<1x8x2x8x8xf32, #tpu.memory_space<vmem>>, vector<1x8x1x8x8xf32>
    %1 = vector.shape_cast %0 : vector<1x8x1x8x8xf32> to vector<8x8x8xf32>
    %c0_4 = arith.constant 0 : index
    %c0_5 = arith.constant 0 : index
    %c1 = arith.constant 1 : index
    %c0_6 = arith.constant 0 : index
    %c0_7 = arith.constant 0 : index
    %2 = vector.load %arg1[%c0_4, %c0_5, %c1, %c0_6, %c0_7] : memref<1x8x2x8x8xf32, #tpu.memory_space<vmem>>, vector<1x8x1x8x8xf32>
    %3 = vector.shape_cast %2 : vector<1x8x1x8x8xf32> to vector<8x8x8xf32>
    %4 = arith.maximumf %1, %3 : vector<8x8x8xf32>
    %5 = vector.extract_strided_slice %4 {offsets = [0, 0, 0], sizes = [8, 8, 4], strides = [1, 1, 1]} : vector<8x8x8xf32> to vector<8x8x4xf32>
    %6 = vector.extract_strided_slice %4 {offsets = [0, 0, 4], sizes = [8, 8, 4], strides = [1, 1, 1]} : vector<8x8x8xf32> to vector<8x8x4xf32>
    %7 = arith.maximumf %5, %6 : vector<8x8x4xf32>
    %cst = arith.constant 0.000000e+00 : f32
    %8 = vector.broadcast %cst : f32 to vector<10x10x4xf32>
    %c0_8 = arith.constant 0 : index
    %c0_9 = arith.constant 0 : index
    %c0_10 = arith.constant 0 : index
    %9 = vector.load %arg11[%c0_8, %c0_9, %c0_10] : memref<10x10x4xf32, #tpu.memory_space<vmem>>, vector<10x10x4xf32>
    tpu.vector_store %arg11[%c0_8, %c0_9, %c0_10], %8 {strides = array<i32>} : memref<10x10x4xf32, #tpu.memory_space<vmem>>, vector<10x10x4xf32>,
    %c1_11 = arith.constant 1 : index
    %c1_12 = arith.constant 1 : index
    %c0_13 = arith.constant 0 : index
    %10 = vector.load %arg11[%c1_11, %c1_12, %c0_13] : memref<10x10x4xf32, #tpu.memory_space<vmem>>, vector<8x8x4xf32>
    tpu.vector_store %arg11[%c1_11, %c1_12, %c0_13], %7 {strides = array<i32>} : memref<10x10x4xf32, #tpu.memory_space<vmem>>, vector<8x8x4xf32>,
    %c0_14 = arith.constant 0 : index
    %c0_15 = arith.constant 0 : index
    %c0_16 = arith.constant 0 : index
    %11 = vector.load %arg11[%c0_14, %c0_15, %c0_16] : memref<10x10x4xf32, #tpu.memory_space<vmem>>, vector<8x8x4xf32>
    %c0_17 = arith.constant 0 : index
    %c1_18 = arith.constant 1 : index
    %c0_19 = arith.constant 0 : index
    %12 = vector.load %arg11[%c0_17, %c1_18, %c0_19] : memref<10x10x4xf32, #tpu.memory_space<vmem>>, vector<8x8x4xf32>
    %c0_20 = arith.constant 0 : index
    %c2 = arith.constant 2 : index
    %c0_21 = arith.constant 0 : index
    %13 = vector.load %arg11[%c0_20, %c2, %c0_21] : memref<10x10x4xf32, #tpu.memory_space<vmem>>, vector<8x8x4xf32>
    %c1_22 = arith.constant 1 : index
    %c0_23 = arith.constant 0 : index
    %c0_24 = arith.constant 0 : index
    %14 = vector.load %arg11[%c1_22, %c0_23, %c0_24] : memref<10x10x4xf32, #tpu.memory_space<vmem>>, vector<8x8x4xf32>
    %c1_25 = arith.constant 1 : index
    %c1_26 = arith.constant 1 : index
    %c0_27 = arith.constant 0 : index
    %15 = vector.load %arg11[%c1_25, %c1_26, %c0_27] : memref<10x10x4xf32, #tpu.memory_space<vmem>>, vector<8x8x4xf32>
    %c1_28 = arith.constant 1 : index
    %c2_29 = arith.constant 2 : index
    %c0_30 = arith.constant 0 : index
    %16 = vector.load %arg11[%c1_28, %c2_29, %c0_30] : memref<10x10x4xf32, #tpu.memory_space<vmem>>, vector<8x8x4xf32>
    %c2_31 = arith.constant 2 : index
    %c0_32 = arith.constant 0 : index
    %c0_33 = arith.constant 0 : index
    %17 = vector.load %arg11[%c2_31, %c0_32, %c0_33] : memref<10x10x4xf32, #tpu.memory_space<vmem>>, vector<8x8x4xf32>
    %c2_34 = arith.constant 2 : index
    %c1_35 = arith.constant 1 : index
    %c0_36 = arith.constant 0 : index
    %18 = vector.load %arg11[%c2_34, %c1_35, %c0_36] : memref<10x10x4xf32, #tpu.memory_space<vmem>>, vector<8x8x4xf32>
    %c2_37 = arith.constant 2 : index
    %c2_38 = arith.constant 2 : index
    %c0_39 = arith.constant 0 : index
    %19 = vector.load %arg11[%c2_37, %c2_38, %c0_39] : memref<10x10x4xf32, #tpu.memory_space<vmem>>, vector<8x8x4xf32>
    %20 = tpu.concatenate %11, %12, %13, %14, %15, %16, %17, %18, %19 in 2 : vector<8x8x4xf32>, vector<8x8x4xf32>, vector<8x8x4xf32>, vector<8x8x4xf32>, vector<8x8x4xf32>, vector<8x8x4xf32>, vector<8x8x4xf32>, vector<8x8x4xf32>, vector<8x8x4xf32> -> vector<8x8x36xf32>
    %21 = vector.shape_cast %20 : vector<8x8x36xf32> to vector<64x36xf32>
    %c0_40 = arith.constant 0 : index
    %c0_41 = arith.constant 0 : index
    %22 = vector.load %arg2[%c0_40, %c0_41] : memref<36x8xf32, #tpu.memory_space<vmem>>, vector<36x8xf32>
    %cst_42 = arith.constant dense<0.000000e+00> : vector<64x8xf32>
    %23 = tpu.matmul %21, %22, %cst_42 {dimension_numbers = #tpu.dot_dimension_numbers<[1], [0], [0], [1], [0, 0, 1, 1], [], []>} : vector<64x36xf32>, vector<36x8xf32>, vector<64x8xf32> -> vector<64x8xf32>
    %c0_43 = arith.constant 0 : index
    %c0_44 = arith.constant 0 : index
    %24 = vector.load %arg3[%c0_43, %c0_44] : memref<1x8xf32, #tpu.memory_space<vmem>>, vector<1x8xf32>
    %25 = vector.broadcast %24 : vector<1x8xf32> to vector<64x8xf32>
    %26 = arith.addf %23, %25 : vector<64x8xf32>
    %cst_45 = arith.constant 0.000000e+00 : f32
    %27 = vector.broadcast %cst_45 : f32 to vector<64x8xf32>
    %28 = arith.maximumf %26, %27 : vector<64x8xf32>
    %cst_46 = arith.constant dense<0.000000e+00> : vector<8xf32>
    %29 = vector.multi_reduction <add>, %28, %cst_46 [0] : vector<64x8xf32> to vector<8xf32>
    %30 = vector.shape_cast %29 : vector<8xf32> to vector<1x8xf32>
    %cst_47 = arith.constant 6.400000e+01 : f32
    %31 = vector.broadcast %cst_47 : f32 to vector<1x8xf32>
    %32 = arith.divf %30, %31 : vector<1x8xf32>
    %33 = vector.broadcast %32 : vector<1x8xf32> to vector<64x8xf32>
    %34 = arith.mulf %28, %33 : vector<64x8xf32>
    %c0_48 = arith.constant 0 : index
    %c0_49 = arith.constant 0 : index
    %35 = vector.load %arg4[%c0_48, %c0_49] : memref<8x4xf32, #tpu.memory_space<vmem>>, vector<8x4xf32>
    %cst_50 = arith.constant dense<0.000000e+00> : vector<64x4xf32>
    %36 = tpu.matmul %34, %35, %cst_50 {dimension_numbers = #tpu.dot_dimension_numbers<[1], [0], [0], [1], [0, 0, 1, 1], [], []>} : vector<64x8xf32>, vector<8x4xf32>, vector<64x4xf32> -> vector<64x4xf32>
    %cst_51 = arith.constant dense<0.000000e+00> : vector<4xf32>
    %37 = vector.multi_reduction <add>, %36, %cst_51 [0] : vector<64x4xf32> to vector<4xf32>
    %38 = vector.shape_cast %37 : vector<4xf32> to vector<1x4xf32>
    %cst_52 = arith.constant 6.400000e+01 : f32
    %39 = vector.broadcast %cst_52 : f32 to vector<1x4xf32>
    %40 = arith.divf %38, %39 : vector<1x4xf32>
    %41 = vector.broadcast %40 : vector<1x4xf32> to vector<64x4xf32>
    %42 = arith.subf %36, %41 : vector<64x4xf32>
    %43 = arith.mulf %42, %42 : vector<64x4xf32>
    %cst_53 = arith.constant dense<0.000000e+00> : vector<4xf32>
    %44 = vector.multi_reduction <add>, %43, %cst_53 [0] : vector<64x4xf32> to vector<4xf32>
    %45 = vector.shape_cast %44 : vector<4xf32> to vector<1x4xf32>
    %cst_54 = arith.constant 6.300000e+01 : f32
    %46 = vector.broadcast %cst_54 : f32 to vector<1x4xf32>
    %47 = arith.divf %45, %46 : vector<1x4xf32>
    %48 = math.sqrt %47 : vector<1x4xf32>
    %cst_55 = arith.constant 9.99999974E-6 : f32
    %49 = vector.broadcast %cst_55 : f32 to vector<1x4xf32>
    %50 = arith.addf %48, %49 : vector<1x4xf32>
    %51 = vector.broadcast %50 : vector<1x4xf32> to vector<64x4xf32>
    %52 = arith.divf %42, %51 : vector<64x4xf32>
    %c0_56 = arith.constant 0 : index
    %c0_57 = arith.constant 0 : index
    %53 = vector.load %arg6[%c0_56, %c0_57] : memref<1x4xf32, #tpu.memory_space<vmem>>, vector<1x4xf32>
    %54 = vector.broadcast %53 : vector<1x4xf32> to vector<64x4xf32>
    %55 = arith.mulf %52, %54 : vector<64x4xf32>
    %c0_58 = arith.constant 0 : index
    %c0_59 = arith.constant 0 : index
    %56 = vector.load %arg7[%c0_58, %c0_59] : memref<1x4xf32, #tpu.memory_space<vmem>>, vector<1x4xf32>
    %57 = vector.broadcast %56 : vector<1x4xf32> to vector<64x4xf32>
    %58 = arith.addf %55, %57 : vector<64x4xf32>
    %59 = arith.negf %58 : vector<64x4xf32>
    %60 = math.exp %59 : vector<64x4xf32>
    %cst_60 = arith.constant 1.000000e+00 : f32
    %61 = vector.broadcast %cst_60 : f32 to vector<64x4xf32>
    %62 = arith.addf %61, %60 : vector<64x4xf32>
    %63 = arith.divf %61, %62 : vector<64x4xf32>
    %c0_61 = arith.constant 0 : index
    %c0_62 = arith.constant 0 : index
    %64 = vector.load %arg5[%c0_61, %c0_62] : memref<4x8xf32, #tpu.memory_space<vmem>>, vector<4x8xf32>
    %cst_63 = arith.constant dense<0.000000e+00> : vector<64x8xf32>
    %65 = tpu.matmul %63, %64, %cst_63 {dimension_numbers = #tpu.dot_dimension_numbers<[1], [0], [0], [1], [0, 0, 1, 1], [], []>} : vector<64x4xf32>, vector<4x8xf32>, vector<64x8xf32> -> vector<64x8xf32>
    %66 = arith.mulf %28, %65 : vector<64x8xf32>
    %cst_64 = arith.constant 0.000000e+00 : f32
    %67 = vector.broadcast %cst_64 : f32 to vector<10x10x8xf32>
    %c0_65 = arith.constant 0 : index
    %c0_66 = arith.constant 0 : index
    %c0_67 = arith.constant 0 : index
    %68 = vector.load %arg12[%c0_65, %c0_66, %c0_67] : memref<10x10x8xf32, #tpu.memory_space<vmem>>, vector<10x10x8xf32>
    tpu.vector_store %arg12[%c0_65, %c0_66, %c0_67], %67 {strides = array<i32>} : memref<10x10x8xf32, #tpu.memory_space<vmem>>, vector<10x10x8xf32>,
    %69 = vector.shape_cast %66 : vector<64x8xf32> to vector<8x8x8xf32>
    %c1_68 = arith.constant 1 : index
    %c1_69 = arith.constant 1 : index
    %c0_70 = arith.constant 0 : index
    %70 = vector.load %arg12[%c1_68, %c1_69, %c0_70] : memref<10x10x8xf32, #tpu.memory_space<vmem>>, vector<8x8x8xf32>
    tpu.vector_store %arg12[%c1_68, %c1_69, %c0_70], %69 {strides = array<i32>} : memref<10x10x8xf32, #tpu.memory_space<vmem>>, vector<8x8x8xf32>,
    %c0_71 = arith.constant 0 : index
    %c0_72 = arith.constant 0 : index
    %c0_73 = arith.constant 0 : index
    %71 = vector.load %arg12[%c0_71, %c0_72, %c0_73] : memref<10x10x8xf32, #tpu.memory_space<vmem>>, vector<8x8x8xf32>
    %c0_74 = arith.constant 0 : index
    %c1_75 = arith.constant 1 : index
    %c0_76 = arith.constant 0 : index
    %72 = vector.load %arg12[%c0_74, %c1_75, %c0_76] : memref<10x10x8xf32, #tpu.memory_space<vmem>>, vector<8x8x8xf32>
    %c0_77 = arith.constant 0 : index
    %c2_78 = arith.constant 2 : index
    %c0_79 = arith.constant 0 : index
    %73 = vector.load %arg12[%c0_77, %c2_78, %c0_79] : memref<10x10x8xf32, #tpu.memory_space<vmem>>, vector<8x8x8xf32>
    %c1_80 = arith.constant 1 : index
    %c0_81 = arith.constant 0 : index
    %c0_82 = arith.constant 0 : index
    %74 = vector.load %arg12[%c1_80, %c0_81, %c0_82] : memref<10x10x8xf32, #tpu.memory_space<vmem>>, vector<8x8x8xf32>
    %c1_83 = arith.constant 1 : index
    %c1_84 = arith.constant 1 : index
    %c0_85 = arith.constant 0 : index
    %75 = vector.load %arg12[%c1_83, %c1_84, %c0_85] : memref<10x10x8xf32, #tpu.memory_space<vmem>>, vector<8x8x8xf32>
    %c1_86 = arith.constant 1 : index
    %c2_87 = arith.constant 2 : index
    %c0_88 = arith.constant 0 : index
    %76 = vector.load %arg12[%c1_86, %c2_87, %c0_88] : memref<10x10x8xf32, #tpu.memory_space<vmem>>, vector<8x8x8xf32>
    %c2_89 = arith.constant 2 : index
    %c0_90 = arith.constant 0 : index
    %c0_91 = arith.constant 0 : index
    %77 = vector.load %arg12[%c2_89, %c0_90, %c0_91] : memref<10x10x8xf32, #tpu.memory_space<vmem>>, vector<8x8x8xf32>
    %c2_92 = arith.constant 2 : index
    %c1_93 = arith.constant 1 : index
    %c0_94 = arith.constant 0 : index
    %78 = vector.load %arg12[%c2_92, %c1_93, %c0_94] : memref<10x10x8xf32, #tpu.memory_space<vmem>>, vector<8x8x8xf32>
    %c2_95 = arith.constant 2 : index
    %c2_96 = arith.constant 2 : index
    %c0_97 = arith.constant 0 : index
    %79 = vector.load %arg12[%c2_95, %c2_96, %c0_97] : memref<10x10x8xf32, #tpu.memory_space<vmem>>, vector<8x8x8xf32>
    %80 = tpu.concatenate %71, %72, %73, %74, %75, %76, %77, %78, %79 in 2 : vector<8x8x8xf32>, vector<8x8x8xf32>, vector<8x8x8xf32>, vector<8x8x8xf32>, vector<8x8x8xf32>, vector<8x8x8xf32>, vector<8x8x8xf32>, vector<8x8x8xf32>, vector<8x8x8xf32> -> vector<8x8x72xf32>
    %81 = vector.shape_cast %80 : vector<8x8x72xf32> to vector<64x72xf32>
    %c0_98 = arith.constant 0 : index
    %c0_99 = arith.constant 0 : index
    %82 = vector.load %arg8[%c0_98, %c0_99] : memref<72x8xf32, #tpu.memory_space<vmem>>, vector<72x8xf32>
    %cst_100 = arith.constant dense<0.000000e+00> : vector<64x8xf32>
    %83 = tpu.matmul %81, %82, %cst_100 {dimension_numbers = #tpu.dot_dimension_numbers<[1], [0], [0], [1], [0, 0, 1, 1], [], []>} : vector<64x72xf32>, vector<72x8xf32>, vector<64x8xf32> -> vector<64x8xf32>
    %c0_101 = arith.constant 0 : index
    %c0_102 = arith.constant 0 : index
    %84 = vector.load %arg9[%c0_101, %c0_102] : memref<1x8xf32, #tpu.memory_space<vmem>>, vector<1x8xf32>
    %85 = vector.broadcast %84 : vector<1x8xf32> to vector<64x8xf32>
    %86 = arith.addf %83, %85 : vector<64x8xf32>
    %cst_103 = arith.constant 0.000000e+00 : f32
    %87 = vector.broadcast %cst_103 : f32 to vector<64x8xf32>
    %88 = arith.maximumf %86, %87 : vector<64x8xf32>
    %c0_104 = arith.constant 0 : index
    %c0_105 = arith.constant 0 : index
    %c0_106 = arith.constant 0 : index
    %89 = vector.load %arg10[%c0_104, %c0_105, %c0_106] : memref<1x64x8xf32, #tpu.memory_space<vmem>>, vector<1x64x8xf32>
    %90 = vector.shape_cast %89 : vector<1x64x8xf32> to vector<64x8xf32>
    %91 = vector.shape_cast %88 : vector<64x8xf32> to vector<1x64x8xf32>
    tpu.vector_store %arg10[%c0_104, %c0_105, %c0_106], %91 {strides = array<i32>} : memref<1x64x8xf32, #tpu.memory_space<vmem>>, vector<1x64x8xf32>,
    return
  }
  func.func @transform_0(%arg0: i32) -> (i32, i32, i32, i32, i32) {
    %c0_i32 = arith.constant 0 : i32
    %c0_i32_0 = arith.constant 0 : i32
    %c0_i32_1 = arith.constant 0 : i32
    %c0_i32_2 = arith.constant 0 : i32
    %c0_i32_3 = arith.constant 0 : i32
    return %arg0, %c0_i32, %c0_i32_0, %c0_i32_1, %c0_i32_2 : i32, i32, i32, i32, i32
  }
  func.func @transform_1(%arg0: i32) -> (i32, i32) {
    %c0_i32 = arith.constant 0 : i32
    %c0_i32_0 = arith.constant 0 : i32
    %c0_i32_1 = arith.constant 0 : i32
    return %c0_i32, %c0_i32_0 : i32, i32
  }
  func.func @transform_2(%arg0: i32) -> (i32, i32) {
    %c0_i32 = arith.constant 0 : i32
    %c0_i32_0 = arith.constant 0 : i32
    %c0_i32_1 = arith.constant 0 : i32
    return %c0_i32, %c0_i32_0 : i32, i32
  }
  func.func @transform_3(%arg0: i32) -> (i32, i32) {
    %c0_i32 = arith.constant 0 : i32
    %c0_i32_0 = arith.constant 0 : i32
    %c0_i32_1 = arith.constant 0 : i32
    return %c0_i32, %c0_i32_0 : i32, i32
  }
  func.func @transform_4(%arg0: i32) -> (i32, i32) {
    %c0_i32 = arith.constant 0 : i32
    %c0_i32_0 = arith.constant 0 : i32
    %c0_i32_1 = arith.constant 0 : i32
    return %c0_i32, %c0_i32_0 : i32, i32
  }
  func.func @transform_5(%arg0: i32) -> (i32, i32) {
    %c0_i32 = arith.constant 0 : i32
    %c0_i32_0 = arith.constant 0 : i32
    %c0_i32_1 = arith.constant 0 : i32
    return %c0_i32, %c0_i32_0 : i32, i32
  }
  func.func @transform_6(%arg0: i32) -> (i32, i32) {
    %c0_i32 = arith.constant 0 : i32
    %c0_i32_0 = arith.constant 0 : i32
    %c0_i32_1 = arith.constant 0 : i32
    return %c0_i32, %c0_i32_0 : i32, i32
  }
  func.func @transform_7(%arg0: i32) -> (i32, i32) {
    %c0_i32 = arith.constant 0 : i32
    %c0_i32_0 = arith.constant 0 : i32
    %c0_i32_1 = arith.constant 0 : i32
    return %c0_i32, %c0_i32_0 : i32, i32
  }
  func.func @transform_8(%arg0: i32) -> (i32, i32) {
    %c0_i32 = arith.constant 0 : i32
    %c0_i32_0 = arith.constant 0 : i32
    %c0_i32_1 = arith.constant 0 : i32
    return %c0_i32, %c0_i32_0 : i32, i32
  }
  func.func @transform_9(%arg0: i32) -> (i32, i32, i32) {
    %c0_i32 = arith.constant 0 : i32
    %c0_i32_0 = arith.constant 0 : i32
    %c0_i32_1 = arith.constant 0 : i32
    return %arg0, %c0_i32, %c0_i32_0 : i32, i32, i32
  }
}

</mosaic_0001>

<llo_original>
// kernel: tpu_custom_call.1
$region0: #{tpu_custom_call.1}
  #allocation0 [shape = 'u32[]', space=smem, size = 0x4, offset = 0x4, fixed_abs, tag = 'smem constant byte address 0x4 - core index']
  #allocation1 [shape = 'u32[144,128]{1,0:T(1,128)}', space=vmem, size = 0x12000, scoped, tag = 'internal scratch']
  #allocation2 [shape = 'f32[10,10,4]{2,1,0:T(8,128)}', space=vmem, size = 0x14000, scoped, tag = 'scratch operand']
  #allocation3 [shape = 'f32[10,10,8]{2,1,0:T(8,128)}', space=vmem, size = 0x14000, scoped, tag = 'scratch operand']
  %s0 = inlined_call_operand.hbm [shape: f32[2,8,2,8,8], index: 0, kind: input, shape index: {}]
  %s1 = inlined_call_operand.vmem [shape: f32[36,8], index: 1, kind: input, shape index: {}]
  %s2 = inlined_call_operand.vmem [shape: f32[1,8], index: 2, kind: input, shape index: {}]
  %s3 = inlined_call_operand.vmem [shape: f32[8,4], index: 3, kind: input, shape index: {}]
  %s4 = inlined_call_operand.vmem [shape: f32[4,8], index: 4, kind: input, shape index: {}]
  %s5 = inlined_call_operand.vmem [shape: f32[1,4], index: 5, kind: input, shape index: {}]
  %s6 = inlined_call_operand.vmem [shape: f32[1,4], index: 6, kind: input, shape index: {}]
  %s7 = inlined_call_operand.vmem [shape: f32[72,8], index: 7, kind: input, shape index: {}]
  %s8 = inlined_call_operand.vmem [shape: f32[1,8], index: 8, kind: input, shape index: {}]
  %s9 = inlined_call_operand.vmem [shape: f32[2,64,8], index: 9, kind: output, shape index: {}]
  %s10 = sld [smem:[#allocation0]]
  $region73: #{tpu_custom_call.1} parent=0
    _
  %s12 = ssub.s32 1, %s10
  %s13 = scalar_select 0, %s12, %s10
  $region1: #{tpu_custom_call.1} parent=0
    #allocation4 [shape = 'u8[131072]{0}', space=vmem, size = 0x20000, scoped, tag = 'input window, operand 0']
    #allocation5 [shape = 's32[2]{0}', space=sflag, size = 0x8, scoped, tag = 'scoped memory for tpu_custom_call.1']
    %14 = vsyncpa [#allocation5], 0
    %s15 = scalar_lea.sflag [#allocation5], 1
    %16 = vsyncpa %s15, 0
    loop: start=0, step=1, limit=4
    $region2: #{tpu_custom_call.1} parent=1 // loop_pre_header
      _
    $region3: #{tpu_custom_call.1} parent=1 // loop_header
      %s18 = sphi 0, %s22
      %p19 = scmp.ge.s32.totalorder %s18, 4
      %s28 = sphi 0, %s30
      %s31 = sphi 0, %s28
      %s32 = sphi 0, %s31
      %s48 = sphi 0, %s32
      %s52 = sphi 0, %s52
      %s54 = sphi 0, %s52
      %s55 = sphi 0, %s54
      %s69 = sphi 0, %s55
      %s73 = sphi 0, %s73
      %s75 = sphi 0, %s73
      %s76 = sphi 0, %s75
      %s90 = sphi 0, %s76
      %s94 = sphi 0, %s94
      %s96 = sphi 0, %s94
      %s97 = sphi 0, %s96
      %s111 = sphi 0, %s97
      %s115 = sphi 0, %s115
      %s117 = sphi 0, %s115
      %s118 = sphi 0, %s117
      %s132 = sphi 0, %s118
      %s136 = sphi 0, %s136
      %s138 = sphi 0, %s136
      %s139 = sphi 0, %s138
      %s153 = sphi 0, %s139
      %s157 = sphi 0, %s157
      %s159 = sphi 0, %s157
      %s160 = sphi 0, %s159
      %s174 = sphi 0, %s160
      %s178 = sphi 0, %s178
      %s180 = sphi 0, %s178
      %s181 = sphi 0, %s180
      %s195 = sphi 0, %s181
      %s199 = sphi 0, %s199
      %s201 = sphi 0, %s199
      %s202 = sphi 0, %s201
      %s216 = sphi 0, %s202
      %s222 = sphi 0, %s224
      %s225 = sphi 0, %s222
      %s226 = sphi 0, %s225
      %s242 = sphi 0, %s226
    $region4: #{tpu_custom_call.1} parent=1 // loop_header_branch
      %21 = sbr.rel (%p19) target = $region8
    $region5: #{tpu_custom_call.1} parent=1 // loop_body
      %s23 = ssub.s32 %s18, 1
      %s24 = ssub.s32 %s18, 2
      %s25 = sadd.s32 %s18, 1
      %s26 = ssub.s32 %s18, %s25
      %p27 = scmp.eq.s32.totalorder %s26, 0
      %s29 = sadd.s32 %s28, 1
      %s30 = scalar_select %p27, %s28, %s29
      %p33 = pneg %p27
      %p34 = scmp.eq.s32.totalorder %s18, 1
      %p35 = por %p33, %p34
      %p36 = scmp.ne.s32.totalorder %s28, %s31
      %p37 = scmp.eq.s32.totalorder %s18, 0
      %p38 = por %p36, %p37
      %p39 = scmp.ne.s32.totalorder %s28, %s31
      %p40 = scmp.eq.s32.totalorder %s23, 1
      %p41 = por %p39, %p40
      %p42 = scmp.ne.s32.totalorder %s31, %s32
      %p43 = scmp.eq.s32.totalorder %s23, 0
      %p44 = por %p42, %p43
      %p45 = scmp.ne.s32.totalorder %s31, %s32
      %p46 = scmp.eq.s32.totalorder %s24, 1
      %p47 = por %p45, %p46
      %p49 = scmp.ne.s32.totalorder %s32, %s48
      %p50 = scmp.eq.s32.totalorder %s24, 0
      %p51 = por %p49, %p50
      %s53 = sadd.s32 %s52, 1
      %p56 = scmp.eq.s32.totalorder %s18, 1
      %p57 = scmp.ne.s32.totalorder %s52, %s54
      %p58 = scmp.eq.s32.totalorder %s18, 0
      %p59 = por %p57, %p58
      %p60 = scmp.ne.s32.totalorder %s52, %s54
      %p61 = scmp.eq.s32.totalorder %s23, 1
      %p62 = por %p60, %p61
      %p63 = scmp.ne.s32.totalorder %s54, %s55
      %p64 = scmp.eq.s32.totalorder %s23, 0
      %p65 = por %p63, %p64
      %p66 = scmp.ne.s32.totalorder %s54, %s55
      %p67 = scmp.eq.s32.totalorder %s24, 1
      %p68 = por %p66, %p67
      %p70 = scmp.ne.s32.totalorder %s55, %s69
      %p71 = scmp.eq.s32.totalorder %s24, 0
      %p72 = por %p70, %p71
      %s74 = sadd.s32 %s73, 1
      %p77 = scmp.eq.s32.totalorder %s18, 1
      %p78 = scmp.ne.s32.totalorder %s73, %s75
      %p79 = scmp.eq.s32.totalorder %s18, 0
      %p80 = por %p78, %p79
      %p81 = scmp.ne.s32.totalorder %s73, %s75
      %p82 = scmp.eq.s32.totalorder %s23, 1
      %p83 = por %p81, %p82
      %p84 = scmp.ne.s32.totalorder %s75, %s76
      %p85 = scmp.eq.s32.totalorder %s23, 0
      %p86 = por %p84, %p85
      %p87 = scmp.ne.s32.totalorder %s75, %s76
      %p88 = scmp.eq.s32.totalorder %s24, 1
      %p89 = por %p87, %p88
      %p91 = scmp.ne.s32.totalorder %s76, %s90
      %p92 = scmp.eq.s32.totalorder %s24, 0
      %p93 = por %p91, %p92
      %s95 = sadd.s32 %s94, 1
      %p98 = scmp.eq.s32.totalorder %s18, 1
      %p99 = scmp.ne.s32.totalorder %s94, %s96
      %p100 = scmp.eq.s32.totalorder %s18, 0
      %p101 = por %p99, %p100
      %p102 = scmp.ne.s32.totalorder %s94, %s96
      %p103 = scmp.eq.s32.totalorder %s23, 1
      %p104 = por %p102, %p103
      %p105 = scmp.ne.s32.totalorder %s96, %s97
      %p106 = scmp.eq.s32.totalorder %s23, 0
      %p107 = por %p105, %p106
      %p108 = scmp.ne.s32.totalorder %s96, %s97
      %p109 = scmp.eq.s32.totalorder %s24, 1
      %p110 = por %p108, %p109
      %p112 = scmp.ne.s32.totalorder %s97, %s111
      %p113 = scmp.eq.s32.totalorder %s24, 0
      %p114 = por %p112, %p113
      %s116 = sadd.s32 %s115, 1
      %p119 = scmp.eq.s32.totalorder %s18, 1
      %p120 = scmp.ne.s32.totalorder %s115, %s117
      %p121 = scmp.eq.s32.totalorder %s18, 0
      %p122 = por %p120, %p121
      %p123 = scmp.ne.s32.totalorder %s115, %s117
      %p124 = scmp.eq.s32.totalorder %s23, 1
      %p125 = por %p123, %p124
      %p126 = scmp.ne.s32.totalorder %s117, %s118
      %p127 = scmp.eq.s32.totalorder %s23, 0
      %p128 = por %p126, %p127
      %p129 = scmp.ne.s32.totalorder %s117, %s118
      %p130 = scmp.eq.s32.totalorder %s24, 1
      %p131 = por %p129, %p130
      %p133 = scmp.ne.s32.totalorder %s118, %s132
      %p134 = scmp.eq.s32.totalorder %s24, 0
      %p135 = por %p133, %p134
      %s137 = sadd.s32 %s136, 1
      %p140 = scmp.eq.s32.totalorder %s18, 1
      %p141 = scmp.ne.s32.totalorder %s136, %s138
      %p142 = scmp.eq.s32.totalorder %s18, 0
      %p143 = por %p141, %p142
      %p144 = scmp.ne.s32.totalorder %s136, %s138
      %p145 = scmp.eq.s32.totalorder %s23, 1
      %p146 = por %p144, %p145
      %p147 = scmp.ne.s32.totalorder %s138, %s139
      %p148 = scmp.eq.s32.totalorder %s23, 0
      %p149 = por %p147, %p148
      %p150 = scmp.ne.s32.totalorder %s138, %s139
      %p151 = scmp.eq.s32.totalorder %s24, 1
      %p152 = por %p150, %p151
      %p154 = scmp.ne.s32.totalorder %s139, %s153
      %p155 = scmp.eq.s32.totalorder %s24, 0
      %p156 = por %p154, %p155
      %s158 = sadd.s32 %s157, 1
      %p161 = scmp.eq.s32.totalorder %s18, 1
      %p162 = scmp.ne.s32.totalorder %s157, %s159
      %p163 = scmp.eq.s32.totalorder %s18, 0
      %p164 = por %p162, %p163
      %p165 = scmp.ne.s32.totalorder %s157, %s159
      %p166 = scmp.eq.s32.totalorder %s23, 1
      %p167 = por %p165, %p166
      %p168 = scmp.ne.s32.totalorder %s159, %s160
      %p169 = scmp.eq.s32.totalorder %s23, 0
      %p170 = por %p168, %p169
      %p171 = scmp.ne.s32.totalorder %s159, %s160
      %p172 = scmp.eq.s32.totalorder %s24, 1
      %p173 = por %p171, %p172
      %p175 = scmp.ne.s32.totalorder %s160, %s174
      %p176 = scmp.eq.s32.totalorder %s24, 0
      %p177 = por %p175, %p176
      %s179 = sadd.s32 %s178, 1
      %p182 = scmp.eq.s32.totalorder %s18, 1
      %p183 = scmp.ne.s32.totalorder %s178, %s180
      %p184 = scmp.eq.s32.totalorder %s18, 0
      %p185 = por %p183, %p184
      %p186 = scmp.ne.s32.totalorder %s178, %s180
      %p187 = scmp.eq.s32.totalorder %s23, 1
      %p188 = por %p186, %p187
      %p189 = scmp.ne.s32.totalorder %s180, %s181
      %p190 = scmp.eq.s32.totalorder %s23, 0
      %p191 = por %p189, %p190
      %p192 = scmp.ne.s32.totalorder %s180, %s181
      %p193 = scmp.eq.s32.totalorder %s24, 1
      %p194 = por %p192, %p193
      %p196 = scmp.ne.s32.totalorder %s181, %s195
      %p197 = scmp.eq.s32.totalorder %s24, 0
      %p198 = por %p196, %p197
      %s200 = sadd.s32 %s199, 1
      %p203 = scmp.eq.s32.totalorder %s18, 1
      %p204 = scmp.ne.s32.totalorder %s199, %s201
      %p205 = scmp.eq.s32.totalorder %s18, 0
      %p206 = por %p204, %p205
      %p207 = scmp.ne.s32.totalorder %s199, %s201
      %p208 = scmp.eq.s32.totalorder %s23, 1
      %p209 = por %p207, %p208
      %p210 = scmp.ne.s32.totalorder %s201, %s202
      %p211 = scmp.eq.s32.totalorder %s23, 0
      %p212 = por %p210, %p211
      %p213 = scmp.ne.s32.totalorder %s201, %s202
      %p214 = scmp.eq.s32.totalorder %s24, 1
      %p215 = por %p213, %p214
      %p217 = scmp.ne.s32.totalorder %s202, %s216
      %p218 = scmp.eq.s32.totalorder %s24, 0
      %p219 = por %p217, %p218
      %s220 = ssub.s32 %s18, %s25
      %p221 = scmp.eq.s32.totalorder %s220, 0
      %s223 = sadd.s32 %s222, 1
      %s224 = scalar_select %p221, %s222, %s223
      %p227 = pneg %p221
      %p228 = scmp.eq.s32.totalorder %s18, 1
      %p229 = por %p227, %p228
      %p230 = scmp.ne.s32.totalorder %s222, %s225
      %p231 = scmp.eq.s32.totalorder %s18, 0
      %p232 = por %p230, %p231
      %p233 = scmp.ne.s32.totalorder %s222, %s225
      %p234 = scmp.eq.s32.totalorder %s23, 1
      %p235 = por %p233, %p234
      %p236 = scmp.ne.s32.totalorder %s225, %s226
      %p237 = scmp.eq.s32.totalorder %s23, 0
      %p238 = por %p236, %p237
      %p239 = scmp.ne.s32.totalorder %s225, %s226
      %p240 = scmp.eq.s32.totalorder %s24, 1
      %p241 = por %p239, %p240
      %p243 = scmp.ne.s32.totalorder %s226, %s242
      %p244 = scmp.eq.s32.totalorder %s24, 0
      %p245 = por %p243, %p244
      %p246 = scmp.le.s32.totalorder 1, %s18
      %p247 = scmp.lt.s32.totalorder %s18, 3
      %p248 = pnand %p246, %p247
      %p249 = pneg %p248
      // Predicated region
      $region9: #{tpu_custom_call.1} parent=5 // pred_check
        _
      $region10: #{tpu_custom_call.1} parent=5 // pred_check_branch
        %251 = sbr.rel (%p248) target = $region12
      $region11: #{tpu_custom_call.1} parent=5 // pred_region
        %s252 = ssub.s32 %s18, 1
        // Predicated region
        $region13: #{tpu_custom_call.1} parent=11 // pred_check
          %p253 = pneg %p65
        $region14: #{tpu_custom_call.1} parent=11 // pred_check_branch
          %255 = sbr.rel (%p253) target = $region16
        $region15: #{tpu_custom_call.1} parent=11 // pred_region
          _
        $region16: #{tpu_custom_call.1} parent=11 // pred_fallthru
          _
        // Predicated region
        $region17: #{tpu_custom_call.1} parent=11 // pred_check
          %p256 = pneg %p86
        $region18: #{tpu_custom_call.1} parent=11 // pred_check_branch
          %258 = sbr.rel (%p256) target = $region20
        $region19: #{tpu_custom_call.1} parent=11 // pred_region
          _
        $region20: #{tpu_custom_call.1} parent=11 // pred_fallthru
          _
        // Predicated region
        $region21: #{tpu_custom_call.1} parent=11 // pred_check
          %p259 = pneg %p107
        $region22: #{tpu_custom_call.1} parent=11 // pred_check_branch
          %261 = sbr.rel (%p259) target = $region24
        $region23: #{tpu_custom_call.1} parent=11 // pred_region
          _
        $region24: #{tpu_custom_call.1} parent=11 // pred_fallthru
          _
        // Predicated region
        $region25: #{tpu_custom_call.1} parent=11 // pred_check
          %p262 = pneg %p128
        $region26: #{tpu_custom_call.1} parent=11 // pred_check_branch
          %264 = sbr.rel (%p262) target = $region28
        $region27: #{tpu_custom_call.1} parent=11 // pred_region
          _
        $region28: #{tpu_custom_call.1} parent=11 // pred_fallthru
          _
        // Predicated region
        $region29: #{tpu_custom_call.1} parent=11 // pred_check
          %p265 = pneg %p149
        $region30: #{tpu_custom_call.1} parent=11 // pred_check_branch
          %267 = sbr.rel (%p265) target = $region32
        $region31: #{tpu_custom_call.1} parent=11 // pred_region
          _
        $region32: #{tpu_custom_call.1} parent=11 // pred_fallthru
          _
        // Predicated region
        $region33: #{tpu_custom_call.1} parent=11 // pred_check
          %p268 = pneg %p170
        $region34: #{tpu_custom_call.1} parent=11 // pred_check_branch
          %270 = sbr.rel (%p268) target = $region36
        $region35: #{tpu_custom_call.1} parent=11 // pred_region
          _
        $region36: #{tpu_custom_call.1} parent=11 // pred_fallthru
          _
        // Predicated region
        $region37: #{tpu_custom_call.1} parent=11 // pred_check
          %p271 = pneg %p191
        $region38: #{tpu_custom_call.1} parent=11 // pred_check_branch
          %273 = sbr.rel (%p271) target = $region40
        $region39: #{tpu_custom_call.1} parent=11 // pred_region
          _
        $region40: #{tpu_custom_call.1} parent=11 // pred_fallthru
          _
        // Predicated region
        $region41: #{tpu_custom_call.1} parent=11 // pred_check
          %p274 = pneg %p212
        $region42: #{tpu_custom_call.1} parent=11 // pred_check_branch
          %276 = sbr.rel (%p274) target = $region44
        $region43: #{tpu_custom_call.1} parent=11 // pred_region
          _
        $region44: #{tpu_custom_call.1} parent=11 // pred_fallthru
          _
      $region12: #{tpu_custom_call.1} parent=5 // pred_fallthru
        _
      %p277 = scmp.lt.s32.totalorder %s18, 2
      // Predicated region
      $region45: #{tpu_custom_call.1} parent=5 // pred_check
        %p278 = pneg %p277
      $region46: #{tpu_custom_call.1} parent=5 // pred_check_branch
        %280 = sbr.rel (%p278) target = $region48
      $region47: #{tpu_custom_call.1} parent=5 // pred_region
        // Predicated region
        $region49: #{tpu_custom_call.1} parent=47 // pred_check
          %p281 = pneg %p38
        $region50: #{tpu_custom_call.1} parent=47 // pred_check_branch
          %283 = sbr.rel (%p281) target = $region52
        $region51: #{tpu_custom_call.1} parent=47 // pred_region
          %s284 = sand.u32 %s28, 1
          %s285 = scalar_lea.sflag [#allocation5], %s284
          %s286 = sand.u32 %s28, 1
          %s287 = smul.addr %s286, 128
          %s288 = scalar_lea.vmem [#allocation4], %s287
          %s290 = ssub.s32 2048, 2048
          %291 = vsyncadd %s285, %s290
          %s292 = smul.addr %s18, 16
          %s293 = smul.addr %s292, 128
          %s294 = scalar_lea.hbm %s0, %s293
          %s295 = sshll.u32 %s288, 4
          %s296 = int_to_ptr.vmem [resolvable:$true] %s295
          %301 = dma.hbm_to_vmem [thread:$0]  %s294, 2048, %s296, %s285, 128, 128, 8
        $region52: #{tpu_custom_call.1} parent=47 // pred_fallthru
          _
      $region48: #{tpu_custom_call.1} parent=5 // pred_fallthru
        _
      %p302 = scmp.le.s32.totalorder 1, %s18
      %p303 = scmp.lt.s32.totalorder %s18, 3
      %p304 = pnand %p302, %p303
      %p305 = pneg %p304
      // Predicated region
      $region53: #{tpu_custom_call.1} parent=5 // pred_check
        _
      $region54: #{tpu_custom_call.1} parent=5 // pred_check_branch
        %307 = sbr.rel (%p304) target = $region56
      $region55: #{tpu_custom_call.1} parent=5 // pred_region
        %s308 = ssub.s32 %s18, 1
        %s309 = sand.u32 %s31, 1
        %s310 = scalar_lea.sflag [#allocation5], %s309
        %s311 = sand.u32 %s31, 1
        %s312 = smul.addr %s311, 128
        %s313 = scalar_lea.vmem [#allocation4], %s312
        // Predicated region
        $region57: #{tpu_custom_call.1} parent=55 // pred_check
          %p314 = pneg %p44
        $region58: #{tpu_custom_call.1} parent=55 // pred_check_branch
          %316 = sbr.rel (%p314) target = $region60
        $region59: #{tpu_custom_call.1} parent=55 // pred_region
          %317 = dma.done %s310, 2048
        $region60: #{tpu_custom_call.1} parent=55 // pred_fallthru
          _
        %s318 = sand.u32 %s31, 1
        %s319 = scalar_lea.sflag [#allocation5], %s318
        %s320 = sand.u32 %s31, 1
        %s321 = smul.addr %s320, 128
        %s322 = scalar_lea.vmem [#allocation4], %s321
        %p323 = pneg %p44
        %p324 = pneg %p41
        %p325 = pneg %p65
        %p326 = pneg %p62
        %p327 = pneg %p86
        %p328 = pneg %p83
        %p329 = pneg %p107
        %p330 = pneg %p104
        %p331 = pneg %p128
        %p332 = pneg %p125
        %p333 = pneg %p149
        %p334 = pneg %p146
        %p335 = pneg %p170
        %p336 = pneg %p167
        %p337 = pneg %p191
        %p338 = pneg %p188
        %p339 = pneg %p212
        %p340 = pneg %p209
        %p341 = pneg %p238
        %p342 = pneg %p235
        %p343 = scmp.lt.s32.totalorder %s23, 1
        %s344 = scalar_select %p343, %s23, 1
        %s345 = smul.addr %s344, 8
        %s346 = smul.addr %s345, 8
        %s347 = scalar_lea.vmem %s9, %s346
        %p348 = scmp.lt.s32.totalorder %s23, 1
        %s349 = scalar_select %p348, %s23, 1
        %s350 = smul.addr %s349, 8
        %s351 = smul.addr %s350, 8
        %s352 = scalar_lea.vmem %s9, %s351
        %v353 = vld [vmem:[%s313] sm:$0xff]
        %v354 = vld [vmem:[%s313 + $0x10] sm:$0xff]
        %v355 = vld [vmem:[%s313 + $0x20] sm:$0xff]
        %v356 = vld [vmem:[%s313 + $0x30] sm:$0xff]
        %v357 = vld [vmem:[%s313 + $0x40] sm:$0xff]
        %v358 = vld [vmem:[%s313 + $0x50] sm:$0xff]
        %v359 = vld [vmem:[%s313 + $0x60] sm:$0xff]
        %v360 = vld [vmem:[%s313 + $0x70] sm:$0xff]
        %s361 = scalar_lea.vmem %s313, 8 [#allocation4]
        %v362 = vld [vmem:[%s361] sm:$0xff]
        %v363 = vld [vmem:[%s361 + $0x10] sm:$0xff]
        %v364 = vld [vmem:[%s361 + $0x20] sm:$0xff]
        %v365 = vld [vmem:[%s361 + $0x30] sm:$0xff]
        %v366 = vld [vmem:[%s361 + $0x40] sm:$0xff]
        %v367 = vld [vmem:[%s361 + $0x50] sm:$0xff]
        %v368 = vld [vmem:[%s361 + $0x60] sm:$0xff]
        %v369 = vld [vmem:[%s361 + $0x70] sm:$0xff]
        %v370 = vmax.f32 %v353, %v362
        %v371 = vmax.f32 %v354, %v363
        %v372 = vmax.f32 %v355, %v364
        %v373 = vmax.f32 %v356, %v365
        %v374 = vmax.f32 %v357, %v366
        %v375 = vmax.f32 %v358, %v367
        %v376 = vmax.f32 %v359, %v368
        %v377 = vmax.f32 %v360, %v369
        %386 = vrot.lane.b32.xlu0 %v370, 124
        %v387 = vpop.permute.xlu0 %386
        %388 = vrot.lane.b32.xlu0 %v371, 124
        %v389 = vpop.permute.xlu0 %388
        %390 = vrot.lane.b32.xlu0 %v372, 124
        %v391 = vpop.permute.xlu0 %390
        %392 = vrot.lane.b32.xlu0 %v373, 124
        %v393 = vpop.permute.xlu0 %392
        %394 = vrot.lane.b32.xlu0 %v374, 124
        %v395 = vpop.permute.xlu0 %394
        %396 = vrot.lane.b32.xlu0 %v375, 124
        %v397 = vpop.permute.xlu0 %396
        %398 = vrot.lane.b32.xlu0 %v376, 124
        %v399 = vpop.permute.xlu0 %398
        %400 = vrot.lane.b32.xlu0 %v377, 124
        %v401 = vpop.permute.xlu0 %400
        %v410 = vmax.f32 %v370, %v387
        %v411 = vmax.f32 %v371, %v389
        %v412 = vmax.f32 %v372, %v391
        %v413 = vmax.f32 %v373, %v393
        %v414 = vmax.f32 %v374, %v395
        %v415 = vmax.f32 %v375, %v397
        %v416 = vmax.f32 %v376, %v399
        %v417 = vmax.f32 %v377, %v401
        %vm418 = vcmask 31744
        %419 = vst.msk [vmem:[#allocation2] sm:$0xff] %vm418, 0.0
        %vm420 = vcmask 25600
        %421 = vst.msk [vmem:[#allocation2 + $0x8] sm:$0x3] %vm420, 0.0
        %422 = vst.msk [vmem:[#allocation2 + $0x10] sm:$0xff] %vm418, 0.0
        %423 = vst.msk [vmem:[#allocation2 + $0x18] sm:$0x3] %vm420, 0.0
        %424 = vst.msk [vmem:[#allocation2 + $0x20] sm:$0xff] %vm418, 0.0
        %425 = vst.msk [vmem:[#allocation2 + $0x28] sm:$0x3] %vm420, 0.0
        %426 = vst.msk [vmem:[#allocation2 + $0x30] sm:$0xff] %vm418, 0.0
        %427 = vst.msk [vmem:[#allocation2 + $0x38] sm:$0x3] %vm420, 0.0
        %428 = vst.msk [vmem:[#allocation2 + $0x40] sm:$0xff] %vm418, 0.0
        %429 = vst.msk [vmem:[#allocation2 + $0x48] sm:$0x3] %vm420, 0.0
        %430 = vst.msk [vmem:[#allocation2 + $0x50] sm:$0xff] %vm418, 0.0
        %431 = vst.msk [vmem:[#allocation2 + $0x58] sm:$0x3] %vm420, 0.0
        %432 = vst.msk [vmem:[#allocation2 + $0x60] sm:$0xff] %vm418, 0.0
        %433 = vst.msk [vmem:[#allocation2 + $0x68] sm:$0x3] %vm420, 0.0
        %434 = vst.msk [vmem:[#allocation2 + $0x70] sm:$0xff] %vm418, 0.0
        %435 = vst.msk [vmem:[#allocation2 + $0x78] sm:$0x3] %vm420, 0.0
        %436 = vst.msk [vmem:[#allocation2 + $0x80] sm:$0xff] %vm418, 0.0
        %437 = vst.msk [vmem:[#allocation2 + $0x88] sm:$0x3] %vm420, 0.0
        %438 = vst.msk [vmem:[#allocation2 + $0x90] sm:$0xff] %vm418, 0.0
        %439 = vst.msk [vmem:[#allocation2 + $0x98] sm:$0x3] %vm420, 0.0
        %s440 = scalar_lea.vmem [#allocation2], 16
        %441 = vst.msk [vmem:[%s440 + $0x1] sm:$0xff] %vm418, %v410
        %442 = vst.msk [vmem:[%s440 + $0x11] sm:$0xff] %vm418, %v411
        %443 = vst.msk [vmem:[%s440 + $0x21] sm:$0xff] %vm418, %v412
        %444 = vst.msk [vmem:[%s440 + $0x31] sm:$0xff] %vm418, %v413
        %445 = vst.msk [vmem:[%s440 + $0x41] sm:$0xff] %vm418, %v414
        %446 = vst.msk [vmem:[%s440 + $0x51] sm:$0xff] %vm418, %v415
        %447 = vst.msk [vmem:[%s440 + $0x61] sm:$0xff] %vm418, %v416
        %448 = vst.msk [vmem:[%s440 + $0x71] sm:$0xff] %vm418, %v417
        %v449 = vld [vmem:[#allocation2] sm:$0xff]
        %v450 = vld [vmem:[#allocation2 + $0x10] sm:$0xff]
        %v451 = vld [vmem:[#allocation2 + $0x20] sm:$0xff]
        %v452 = vld [vmem:[#allocation2 + $0x30] sm:$0xff]
        %v453 = vld [vmem:[#allocation2 + $0x40] sm:$0xff]
        %v454 = vld [vmem:[#allocation2 + $0x50] sm:$0xff]
        %v455 = vld [vmem:[#allocation2 + $0x60] sm:$0xff]
        %v456 = vld [vmem:[#allocation2 + $0x70] sm:$0xff]
        %v457 = vld [vmem:[#allocation2 + $0x1] sm:$0xff]
        %v458 = vld [vmem:[#allocation2 + $0x11] sm:$0xff]
        %v459 = vld [vmem:[#allocation2 + $0x21] sm:$0xff]
        %v460 = vld [vmem:[#allocation2 + $0x31] sm:$0xff]
        %v461 = vld [vmem:[#allocation2 + $0x41] sm:$0xff]
        %v462 = vld [vmem:[#allocation2 + $0x51] sm:$0xff]
        %v463 = vld [vmem:[#allocation2 + $0x61] sm:$0xff]
        %v464 = vld [vmem:[#allocation2 + $0x71] sm:$0xff]
        %v465 = vld [vmem:[#allocation2 + $0x2] sm:$0xff]
        %v466 = vld [vmem:[#allocation2 + $0x12] sm:$0xff]
        %v467 = vld [vmem:[#allocation2 + $0x22] sm:$0xff]
        %v468 = vld [vmem:[#allocation2 + $0x32] sm:$0xff]
        %v469 = vld [vmem:[#allocation2 + $0x42] sm:$0xff]
        %v470 = vld [vmem:[#allocation2 + $0x52] sm:$0xff]
        %v471 = vld [vmem:[#allocation2 + $0x62] sm:$0xff]
        %v472 = vld [vmem:[#allocation2 + $0x72] sm:$0xff]
        %v473 = vld [vmem:[%s440] sm:$0xff]
        %v474 = vld [vmem:[%s440 + $0x10] sm:$0xff]
        %v475 = vld [vmem:[%s440 + $0x20] sm:$0xff]
        %v476 = vld [vmem:[%s440 + $0x30] sm:$0xff]
        %v477 = vld [vmem:[%s440 + $0x40] sm:$0xff]
        %v478 = vld [vmem:[%s440 + $0x50] sm:$0xff]
        %v479 = vld [vmem:[%s440 + $0x60] sm:$0xff]
        %v480 = vld [vmem:[%s440 + $0x70] sm:$0xff]
        %v481 = vld [vmem:[%s440 + $0x1] sm:$0xff]
        %v482 = vld [vmem:[%s440 + $0x11] sm:$0xff]
        %v483 = vld [vmem:[%s440 + $0x21] sm:$0xff]
        %v484 = vld [vmem:[%s440 + $0x31] sm:$0xff]
        %v485 = vld [vmem:[%s440 + $0x41] sm:$0xff]
        %v486 = vld [vmem:[%s440 + $0x51] sm:$0xff]
        %v487 = vld [vmem:[%s440 + $0x61] sm:$0xff]
        %v488 = vld [vmem:[%s440 + $0x71] sm:$0xff]
        %v489 = vld [vmem:[%s440 + $0x2] sm:$0xff]
        %v490 = vld [vmem:[%s440 + $0x12] sm:$0xff]
        %v491 = vld [vmem:[%s440 + $0x22] sm:$0xff]
        %v492 = vld [vmem:[%s440 + $0x32] sm:$0xff]
        %v493 = vld [vmem:[%s440 + $0x42] sm:$0xff]
        %v494 = vld [vmem:[%s440 + $0x52] sm:$0xff]
        %v495 = vld [vmem:[%s440 + $0x62] sm:$0xff]
        %v496 = vld [vmem:[%s440 + $0x72] sm:$0xff]
        %s497 = scalar_lea.vmem [#allocation2], 32
        %v498 = vld [vmem:[%s497] sm:$0xff]
        %v499 = vld [vmem:[%s497 + $0x10] sm:$0xff]
        %v500 = vld [vmem:[%s497 + $0x20] sm:$0xff]
        %v501 = vld [vmem:[%s497 + $0x30] sm:$0xff]
        %v502 = vld [vmem:[%s497 + $0x40] sm:$0xff]
        %v503 = vld [vmem:[%s497 + $0x50] sm:$0xff]
        %v504 = vld [vmem:[%s497 + $0x60] sm:$0xff]
        %v505 = vld [vmem:[%s497 + $0x70] sm:$0xff]
        %v506 = vld [vmem:[%s497 + $0x1] sm:$0xff]
        %v507 = vld [vmem:[%s497 + $0x11] sm:$0xff]
        %v508 = vld [vmem:[%s497 + $0x21] sm:$0xff]
        %v509 = vld [vmem:[%s497 + $0x31] sm:$0xff]
        %v510 = vld [vmem:[%s497 + $0x41] sm:$0xff]
        %v511 = vld [vmem:[%s497 + $0x51] sm:$0xff]
        %v512 = vld [vmem:[%s497 + $0x61] sm:$0xff]
        %v513 = vld [vmem:[%s497 + $0x71] sm:$0xff]
        %v514 = vld [vmem:[%s497 + $0x2] sm:$0xff]
        %v515 = vld [vmem:[%s497 + $0x12] sm:$0xff]
        %v516 = vld [vmem:[%s497 + $0x22] sm:$0xff]
        %v517 = vld [vmem:[%s497 + $0x32] sm:$0xff]
        %v518 = vld [vmem:[%s497 + $0x42] sm:$0xff]
        %v519 = vld [vmem:[%s497 + $0x52] sm:$0xff]
        %v520 = vld [vmem:[%s497 + $0x62] sm:$0xff]
        %v521 = vld [vmem:[%s497 + $0x72] sm:$0xff]
        %530 = vrot.lane.b32.xlu0 %v457, 4
        %v531 = vpop.permute.xlu0 %530
        %532 = vrot.lane.b32.xlu0 %v458, 4
        %v533 = vpop.permute.xlu0 %532
        %534 = vrot.lane.b32.xlu0 %v459, 4
        %v535 = vpop.permute.xlu0 %534
        %536 = vrot.lane.b32.xlu0 %v460, 4
        %v537 = vpop.permute.xlu0 %536
        %538 = vrot.lane.b32.xlu0 %v461, 4
        %v539 = vpop.permute.xlu0 %538
        %540 = vrot.lane.b32.xlu0 %v462, 4
        %v541 = vpop.permute.xlu0 %540
        %542 = vrot.lane.b32.xlu0 %v463, 4
        %v543 = vpop.permute.xlu0 %542
        %544 = vrot.lane.b32.xlu0 %v464, 4
        %v545 = vpop.permute.xlu0 %544
        %562 = vrot.lane.b32.xlu0 %v465, 8
        %v563 = vpop.permute.xlu0 %562
        %564 = vrot.lane.b32.xlu0 %v466, 8
        %v565 = vpop.permute.xlu0 %564
        %566 = vrot.lane.b32.xlu0 %v467, 8
        %v567 = vpop.permute.xlu0 %566
        %568 = vrot.lane.b32.xlu0 %v468, 8
        %v569 = vpop.permute.xlu0 %568
        %570 = vrot.lane.b32.xlu0 %v469, 8
        %v571 = vpop.permute.xlu0 %570
        %572 = vrot.lane.b32.xlu0 %v470, 8
        %v573 = vpop.permute.xlu0 %572
        %574 = vrot.lane.b32.xlu0 %v471, 8
        %v575 = vpop.permute.xlu0 %574
        %576 = vrot.lane.b32.xlu0 %v472, 8
        %v577 = vpop.permute.xlu0 %576
        %594 = vrot.lane.b32.xlu0 %v473, 12
        %v595 = vpop.permute.xlu0 %594
        %596 = vrot.lane.b32.xlu0 %v474, 12
        %v597 = vpop.permute.xlu0 %596
        %598 = vrot.lane.b32.xlu0 %v475, 12
        %v599 = vpop.permute.xlu0 %598
        %600 = vrot.lane.b32.xlu0 %v476, 12
        %v601 = vpop.permute.xlu0 %600
        %602 = vrot.lane.b32.xlu0 %v477, 12
        %v603 = vpop.permute.xlu0 %602
        %604 = vrot.lane.b32.xlu0 %v478, 12
        %v605 = vpop.permute.xlu0 %604
        %606 = vrot.lane.b32.xlu0 %v479, 12
        %v607 = vpop.permute.xlu0 %606
        %608 = vrot.lane.b32.xlu0 %v480, 12
        %v609 = vpop.permute.xlu0 %608
        %626 = vrot.lane.b32.xlu0 %v481, 16
        %v627 = vpop.permute.xlu0 %626
        %628 = vrot.lane.b32.xlu0 %v482, 16
        %v629 = vpop.permute.xlu0 %628
        %630 = vrot.lane.b32.xlu0 %v483, 16
        %v631 = vpop.permute.xlu0 %630
        %632 = vrot.lane.b32.xlu0 %v484, 16
        %v633 = vpop.permute.xlu0 %632
        %634 = vrot.lane.b32.xlu0 %v485, 16
        %v635 = vpop.permute.xlu0 %634
        %636 = vrot.lane.b32.xlu0 %v486, 16
        %v637 = vpop.permute.xlu0 %636
        %638 = vrot.lane.b32.xlu0 %v487, 16
        %v639 = vpop.permute.xlu0 %638
        %640 = vrot.lane.b32.xlu0 %v488, 16
        %v641 = vpop.permute.xlu0 %640
        %658 = vrot.lane.b32.xlu0 %v489, 20
        %v659 = vpop.permute.xlu0 %658
        %660 = vrot.lane.b32.xlu0 %v490, 20
        %v661 = vpop.permute.xlu0 %660
        %662 = vrot.lane.b32.xlu0 %v491, 20
        %v663 = vpop.permute.xlu0 %662
        %664 = vrot.lane.b32.xlu0 %v492, 20
        %v665 = vpop.permute.xlu0 %664
        %666 = vrot.lane.b32.xlu0 %v493, 20
        %v667 = vpop.permute.xlu0 %666
        %668 = vrot.lane.b32.xlu0 %v494, 20
        %v669 = vpop.permute.xlu0 %668
        %670 = vrot.lane.b32.xlu0 %v495, 20
        %v671 = vpop.permute.xlu0 %670
        %672 = vrot.lane.b32.xlu0 %v496, 20
        %v673 = vpop.permute.xlu0 %672
        %690 = vrot.lane.b32.xlu0 %v498, 24
        %v691 = vpop.permute.xlu0 %690
        %692 = vrot.lane.b32.xlu0 %v499, 24
        %v693 = vpop.permute.xlu0 %692
        %694 = vrot.lane.b32.xlu0 %v500, 24
        %v695 = vpop.permute.xlu0 %694
        %696 = vrot.lane.b32.xlu0 %v501, 24
        %v697 = vpop.permute.xlu0 %696
        %698 = vrot.lane.b32.xlu0 %v502, 24
        %v699 = vpop.permute.xlu0 %698
        %700 = vrot.lane.b32.xlu0 %v503, 24
        %v701 = vpop.permute.xlu0 %700
        %702 = vrot.lane.b32.xlu0 %v504, 24
        %v703 = vpop.permute.xlu0 %702
        %704 = vrot.lane.b32.xlu0 %v505, 24
        %v705 = vpop.permute.xlu0 %704
        %722 = vrot.lane.b32.xlu0 %v506, 28
        %v723 = vpop.permute.xlu0 %722
        %724 = vrot.lane.b32.xlu0 %v507, 28
        %v725 = vpop.permute.xlu0 %724
        %726 = vrot.lane.b32.xlu0 %v508, 28
        %v727 = vpop.permute.xlu0 %726
        %728 = vrot.lane.b32.xlu0 %v509, 28
        %v729 = vpop.permute.xlu0 %728
        %730 = vrot.lane.b32.xlu0 %v510, 28
        %v731 = vpop.permute.xlu0 %730
        %732 = vrot.lane.b32.xlu0 %v511, 28
        %v733 = vpop.permute.xlu0 %732
        %734 = vrot.lane.b32.xlu0 %v512, 28
        %v735 = vpop.permute.xlu0 %734
        %736 = vrot.lane.b32.xlu0 %v513, 28
        %v737 = vpop.permute.xlu0 %736
        %754 = vrot.lane.b32.xlu0 %v514, 32
        %v755 = vpop.permute.xlu0 %754
        %756 = vrot.lane.b32.xlu0 %v515, 32
        %v757 = vpop.permute.xlu0 %756
        %758 = vrot.lane.b32.xlu0 %v516, 32
        %v759 = vpop.permute.xlu0 %758
        %760 = vrot.lane.b32.xlu0 %v517, 32
        %v761 = vpop.permute.xlu0 %760
        %762 = vrot.lane.b32.xlu0 %v518, 32
        %v763 = vpop.permute.xlu0 %762
        %764 = vrot.lane.b32.xlu0 %v519, 32
        %v765 = vpop.permute.xlu0 %764
        %766 = vrot.lane.b32.xlu0 %v520, 32
        %v767 = vpop.permute.xlu0 %766
        %768 = vrot.lane.b32.xlu0 %v521, 32
        %v769 = vpop.permute.xlu0 %768
        %v778 = vsel %vm418, %v449, %v531
        %v779 = vsel %vm418, %v450, %v533
        %v780 = vsel %vm418, %v451, %v535
        %v781 = vsel %vm418, %v452, %v537
        %v782 = vsel %vm418, %v453, %v539
        %v783 = vsel %vm418, %v454, %v541
        %v784 = vsel %vm418, %v455, %v543
        %v785 = vsel %vm418, %v456, %v545
        %vm786 = vcmask 64512
        %v787 = vsel %vm786, %v778, %v563
        %v788 = vsel %vm786, %v779, %v565
        %v789 = vsel %vm786, %v780, %v567
        %v790 = vsel %vm786, %v781, %v569
        %v791 = vsel %vm786, %v782, %v571
        %v792 = vsel %vm786, %v783, %v573
        %v793 = vsel %vm786, %v784, %v575
        %v794 = vsel %vm786, %v785, %v577
        %vm795 = vcmask 97280
        %v796 = vsel %vm795, %v787, %v595
        %v797 = vsel %vm795, %v788, %v597
        %v798 = vsel %vm795, %v789, %v599
        %v799 = vsel %vm795, %v790, %v601
        %v800 = vsel %vm795, %v791, %v603
        %v801 = vsel %vm795, %v792, %v605
        %v802 = vsel %vm795, %v793, %v607
        %v803 = vsel %vm795, %v794, %v609
        %vm804 = vcmask 130048
        %v805 = vsel %vm804, %v796, %v627
        %v806 = vsel %vm804, %v797, %v629
        %v807 = vsel %vm804, %v798, %v631
        %v808 = vsel %vm804, %v799, %v633
        %v809 = vsel %vm804, %v800, %v635
        %v810 = vsel %vm804, %v801, %v637
        %v811 = vsel %vm804, %v802, %v639
        %v812 = vsel %vm804, %v803, %v641
        %vm813 = vcmask 162816
        %v814 = vsel %vm813, %v805, %v659
        %v815 = vsel %vm813, %v806, %v661
        %v816 = vsel %vm813, %v807, %v663
        %v817 = vsel %vm813, %v808, %v665
        %v818 = vsel %vm813, %v809, %v667
        %v819 = vsel %vm813, %v810, %v669
        %v820 = vsel %vm813, %v811, %v671
        %v821 = vsel %vm813, %v812, %v673
        %vm822 = vcmask 195584
        %v823 = vsel %vm822, %v814, %v691
        %v824 = vsel %vm822, %v815, %v693
        %v825 = vsel %vm822, %v816, %v695
        %v826 = vsel %vm822, %v817, %v697
        %v827 = vsel %vm822, %v818, %v699
        %v828 = vsel %vm822, %v819, %v701
        %v829 = vsel %vm822, %v820, %v703
        %v830 = vsel %vm822, %v821, %v705
        %vm831 = vcmask 228352
        %v832 = vsel %vm831, %v823, %v723
        %v833 = vsel %vm831, %v824, %v725
        %v834 = vsel %vm831, %v825, %v727
        %v835 = vsel %vm831, %v826, %v729
        %v836 = vsel %vm831, %v827, %v731
        %v837 = vsel %vm831, %v828, %v733
        %v838 = vsel %vm831, %v829, %v735
        %v839 = vsel %vm831, %v830, %v737
        %vm840 = vcmask 261120
        %v841 = vsel %vm840, %v832, %v755
        %v842 = vsel %vm840, %v833, %v757
        %v843 = vsel %vm840, %v834, %v759
        %v844 = vsel %vm840, %v835, %v761
        %v845 = vsel %vm840, %v836, %v763
        %v846 = vsel %vm840, %v837, %v765
        %v847 = vsel %vm840, %v838, %v767
        %v848 = vsel %vm840, %v839, %v769
        %v849 = vld [vmem:[%s1] sm:$0xff]
        %v850 = vld [vmem:[%s1 + $0x8] sm:$0xff]
        %v851 = vld [vmem:[%s1 + $0x10] sm:$0xff]
        %v852 = vld [vmem:[%s1 + $0x18] sm:$0xff]
        %v853 = vld [vmem:[%s1 + $0x20] sm:$0xf]
        %v854 = vld [vmem:[%s2] sm:$0x1]
        %v856 = vlaneseq
        %v857 = vshrl.u32 %v856, 7
        %v858 = vsub.s32 0, %v857
        %v859 = vrot.slane %v854, %v858
        %vm861 = vcmask 293888
        %v863 = vsel %vm861, %v841, 0
        %v866 = vsel %vm861, %v842, 0
        %v869 = vsel %vm861, %v843, 0
        %v872 = vsel %vm861, %v844, 0
        %v875 = vsel %vm861, %v845, 0
        %v878 = vsel %vm861, %v846, 0
        %v881 = vsel %vm861, %v847, 0
        %v884 = vsel %vm861, %v848, 0
        %vm886 = vcmask 1043456
        %v888 = vsel %vm886, %v853, 0
        %890 = vmatprep.subr.mxu0 0.0
        %891 = vmatpush1.msra.mxu0 0.0
        %892 = vmatprep.subr.mxu0 0.0
        %893 = vmatpush1.msra.mxu0 0.0
        %894 = vmatprep.subr.mxu0 0.0
        %895 = vmatpush1.msra.mxu0 0.0
        %896 = vmatprep.subr.mxu0 0.0
        %897 = vmatpush1.msra.mxu0 0.0
        %898 = vmatprep.subr.mxu0 0.0
        %899 = vmatpush1.msra.mxu0 0.0
        %900 = vmatprep.subr.mxu0 0.0
        %901 = vmatpush1.msra.mxu0 0.0
        %902 = vmatprep.subr.mxu0 0.0
        %903 = vmatpush1.msra.mxu0 0.0
        %904 = vmatprep.subr.mxu0 0.0
        %905 = vmatpush1.msra.mxu0 0.0
        %906 = vmatprep.subr.mxu0 0.0
        %907 = vmatpush1.msra.mxu0 0.0
        %908 = vmatprep.subr.mxu0 0.0
        %909 = vmatpush1.msra.mxu0 0.0
        %910 = vmatprep.subr.mxu0 0.0
        %911 = vmatpush1.msra.mxu0 0.0
        %912 = vmatprep.subr.mxu0 0.0
        %913 = vmatpush1.msra.mxu0 %v888
        %914 = vmatprep.subr.mxu0 0.0
        %915 = vmatpush1.msra.mxu0 %v852
        %916 = vmatprep.subr.mxu0 0.0
        %917 = vmatpush1.msra.mxu0 %v851
        %918 = vmatprep.subr.mxu0 0.0
        %919 = vmatpush1.msra.mxu0 %v850
        %920 = vmatprep.subr.mxu0 0.0
        %921 = vmatpush1.msra.mxu0 %v849
        %922 = vmatprep.subr.mxu0 0.0
        %923 = vmatpush2.msra.mxu0 0.0
        %924 = vmatprep.subr.mxu0 0.0
        %925 = vmatpush2.msra.mxu0 0.0
        %926 = vmatprep.subr.mxu0 0.0
        %927 = vmatpush2.msra.mxu0 0.0
        %928 = vmatprep.subr.mxu0 0.0
        %929 = vmatpush2.msra.mxu0 0.0
        %930 = vmatprep.subr.mxu0 0.0
        %931 = vmatpush2.msra.mxu0 0.0
        %932 = vmatprep.subr.mxu0 0.0
        %933 = vmatpush2.msra.mxu0 0.0
        %934 = vmatprep.subr.mxu0 0.0
        %935 = vmatpush2.msra.mxu0 0.0
        %936 = vmatprep.subr.mxu0 0.0
        %937 = vmatpush2.msra.mxu0 0.0
        %938 = vmatprep.subr.mxu0 0.0
        %939 = vmatpush2.msra.mxu0 0.0
        %940 = vmatprep.subr.mxu0 0.0
        %941 = vmatpush2.msra.mxu0 0.0
        %942 = vmatprep.subr.mxu0 0.0
        %943 = vmatpush2.msra.mxu0 0.0
        %944 = vmatprep.subr.mxu0 0.0
        %945 = vmatpush2.msra.mxu0 0.0
        %946 = vmatprep.subr.mxu0 0.0
        %947 = vmatpush2.msra.mxu0 0.0
        %948 = vmatprep.subr.mxu0 0.0
        %949 = vmatpush2.msra.mxu0 0.0
        %950 = vmatprep.subr.mxu0 0.0
        %951 = vmatpush2.msra.mxu0 0.0
        %952 = vmatprep.subr.mxu0 0.0
        %953 = vmatpush2.msra.mxu0 0.0
        %954 = vmatprep.mubr.f32.mxu0 0.0
        %955 = vmatmul.mubr.f32.gmra.mxu0 %v863
        %v956 = vpop.f32.mrf.mxu0
        %v957 = vadd.f32 %v859, %v956
        %v958 = vpop.f32.mrf.mxu0
        %959 = vmatprep.mubr.f32.mxu0 0.0
        %960 = vmatmul.mubr.f32.gmra.mxu0 %v866
        %v961 = vpop.f32.mrf.mxu0
        %v962 = vadd.f32 %v859, %v961
        %v963 = vpop.f32.mrf.mxu0
        %964 = vmatprep.mubr.f32.mxu0 0.0
        %965 = vmatmul.mubr.f32.gmra.mxu0 %v869
        %v966 = vpop.f32.mrf.mxu0
        %v967 = vadd.f32 %v859, %v966
        %v968 = vpop.f32.mrf.mxu0
        %969 = vmatprep.mubr.f32.mxu0 0.0
        %970 = vmatmul.mubr.f32.gmra.mxu0 %v872
        %v971 = vpop.f32.mrf.mxu0
        %v972 = vadd.f32 %v859, %v971
        %v973 = vpop.f32.mrf.mxu0
        %974 = vmatprep.mubr.f32.mxu0 0.0
        %975 = vmatmul.mubr.f32.gmra.mxu0 %v875
        %v976 = vpop.f32.mrf.mxu0
        %v977 = vadd.f32 %v859, %v976
        %v978 = vpop.f32.mrf.mxu0
        %979 = vmatprep.mubr.f32.mxu0 0.0
        %980 = vmatmul.mubr.f32.gmra.mxu0 %v878
        %v981 = vpop.f32.mrf.mxu0
        %v982 = vadd.f32 %v859, %v981
        %v983 = vpop.f32.mrf.mxu0
        %984 = vmatprep.mubr.f32.mxu0 0.0
        %985 = vmatmul.mubr.f32.gmra.mxu0 %v881
        %v986 = vpop.f32.mrf.mxu0
        %v987 = vadd.f32 %v859, %v986
        %v988 = vpop.f32.mrf.mxu0
        %989 = vmatprep.mubr.f32.mxu0 0.0
        %990 = vmatmul.mubr.f32.gmra.mxu0 %v884
        %v991 = vpop.f32.mrf.mxu0
        %v992 = vadd.f32 %v859, %v991
        %v993 = vpop.f32.mrf.mxu0
        %994 = vdwg.mxu0
        %v995 = vmax.f32 %v957, 0.0
        %v996 = vmax.f32 %v962, 0.0
        %v997 = vmax.f32 %v967, 0.0
        %v998 = vmax.f32 %v972, 0.0
        %v999 = vmax.f32 %v977, 0.0
        %v1000 = vmax.f32 %v982, 0.0
        %v1001 = vmax.f32 %v987, 0.0
        %v1002 = vmax.f32 %v992, 0.0
        %v1003 = vsel %vm786, %v995, 0.0
        %v1004 = vsel %vm786, %v996, 0.0
        %v1005 = vadd.f32 %v1003, %v1004
        %v1006 = vsel %vm786, %v997, 0.0
        %v1007 = vadd.f32 %v1005, %v1006
        %v1008 = vsel %vm786, %v998, 0.0
        %v1009 = vadd.f32 %v1007, %v1008
        %v1010 = vsel %vm786, %v999, 0.0
        %v1011 = vadd.f32 %v1009, %v1010
        %v1012 = vsel %vm786, %v1000, 0.0
        %v1013 = vadd.f32 %v1011, %v1012
        %v1014 = vsel %vm786, %v1001, 0.0
        %v1015 = vadd.f32 %v1013, %v1014
        %v1016 = vsel %vm786, %v1002, 0.0
        %v1017 = vadd.f32 %v1015, %v1016
        %v1018 = vrot.slane %v1017, 4
        %v1019 = vadd.f32 %v1017, %v1018
        %v1020 = vrot.slane %v1019, 2
        %v1021 = vadd.f32 %v1019, %v1020
        %v1022 = vrot.slane %v1021, 1
        %v1023 = vadd.f32 %v1021, %v1022
        %v1024 = vrcp.pop 64.0
        %v1025 = vmul.f32 %v1023, %v1024
        %v1026 = vmul.f32 %v995, %v1025
        %v1027 = vmul.f32 %v996, %v1025
        %v1028 = vmul.f32 %v997, %v1025
        %v1029 = vmul.f32 %v998, %v1025
        %v1030 = vmul.f32 %v999, %v1025
        %v1031 = vmul.f32 %v1000, %v1025
        %v1032 = vmul.f32 %v1001, %v1025
        %v1033 = vmul.f32 %v1002, %v1025
        %v1034 = vld [vmem:[%s3] sm:$0xff]
        %v1036 = vsel %vm786, %v1026, 0
        %v1039 = vsel %vm786, %v1027, 0
        %v1042 = vsel %vm786, %v1028, 0
        %v1045 = vsel %vm786, %v1029, 0
        %v1048 = vsel %vm786, %v1030, 0
        %v1051 = vsel %vm786, %v1031, 0
        %v1054 = vsel %vm786, %v1032, 0
        %v1057 = vsel %vm786, %v1033, 0
        %1059 = vmatprep.subr.mxu0 0.0
        %1060 = vmatpush1.msra.mxu0 0.0
        %1061 = vmatprep.subr.mxu0 0.0
        %1062 = vmatpush1.msra.mxu0 0.0
        %1063 = vmatprep.subr.mxu0 0.0
        %1064 = vmatpush1.msra.mxu0 0.0
        %1065 = vmatprep.subr.mxu0 0.0
        %1066 = vmatpush1.msra.mxu0 0.0
        %1067 = vmatprep.subr.mxu0 0.0
        %1068 = vmatpush1.msra.mxu0 0.0
        %1069 = vmatprep.subr.mxu0 0.0
        %1070 = vmatpush1.msra.mxu0 0.0
        %1071 = vmatprep.subr.mxu0 0.0
        %1072 = vmatpush1.msra.mxu0 0.0
        %1073 = vmatprep.subr.mxu0 0.0
        %1074 = vmatpush1.msra.mxu0 0.0
        %1075 = vmatprep.subr.mxu0 0.0
        %1076 = vmatpush1.msra.mxu0 0.0
        %1077 = vmatprep.subr.mxu0 0.0
        %1078 = vmatpush1.msra.mxu0 0.0
        %1079 = vmatprep.subr.mxu0 0.0
        %1080 = vmatpush1.msra.mxu0 0.0
        %1081 = vmatprep.subr.mxu0 0.0
        %1082 = vmatpush1.msra.mxu0 0.0
        %1083 = vmatprep.subr.mxu0 0.0
        %1084 = vmatpush1.msra.mxu0 0.0
        %1085 = vmatprep.subr.mxu0 0.0
        %1086 = vmatpush1.msra.mxu0 0.0
        %1087 = vmatprep.subr.mxu0 0.0
        %1088 = vmatpush1.msra.mxu0 0.0
        %1089 = vmatprep.subr.mxu0 0.0
        %1090 = vmatpush1.msra.mxu0 %v1034
        %1091 = vmatprep.subr.mxu0 0.0
        %1092 = vmatpush2.msra.mxu0 0.0
        %1093 = vmatprep.subr.mxu0 0.0
        %1094 = vmatpush2.msra.mxu0 0.0
        %1095 = vmatprep.subr.mxu0 0.0
        %1096 = vmatpush2.msra.mxu0 0.0
        %1097 = vmatprep.subr.mxu0 0.0
        %1098 = vmatpush2.msra.mxu0 0.0
        %1099 = vmatprep.subr.mxu0 0.0
        %1100 = vmatpush2.msra.mxu0 0.0
        %1101 = vmatprep.subr.mxu0 0.0
        %1102 = vmatpush2.msra.mxu0 0.0
        %1103 = vmatprep.subr.mxu0 0.0
        %1104 = vmatpush2.msra.mxu0 0.0
        %1105 = vmatprep.subr.mxu0 0.0
        %1106 = vmatpush2.msra.mxu0 0.0
        %1107 = vmatprep.subr.mxu0 0.0
        %1108 = vmatpush2.msra.mxu0 0.0
        %1109 = vmatprep.subr.mxu0 0.0
        %1110 = vmatpush2.msra.mxu0 0.0
        %1111 = vmatprep.subr.mxu0 0.0
        %1112 = vmatpush2.msra.mxu0 0.0
        %1113 = vmatprep.subr.mxu0 0.0
        %1114 = vmatpush2.msra.mxu0 0.0
        %1115 = vmatprep.subr.mxu0 0.0
        %1116 = vmatpush2.msra.mxu0 0.0
        %1117 = vmatprep.subr.mxu0 0.0
        %1118 = vmatpush2.msra.mxu0 0.0
        %1119 = vmatprep.subr.mxu0 0.0
        %1120 = vmatpush2.msra.mxu0 0.0
        %1121 = vmatprep.subr.mxu0 0.0
        %1122 = vmatpush2.msra.mxu0 0.0
        %1123 = vmatprep.mubr.f32.mxu0 0.0
        %1124 = vmatmul.mubr.f32.gmra.mxu0 %v1036
        %v1125 = vpop.f32.mrf.mxu0
        %v1126 = vadd.f32 0.0, %v1125
        %v1127 = vpop.f32.mrf.mxu0
        %1128 = vmatprep.mubr.f32.mxu0 0.0
        %1129 = vmatmul.mubr.f32.gmra.mxu0 %v1039
        %v1130 = vpop.f32.mrf.mxu0
        %v1131 = vadd.f32 0.0, %v1130
        %v1132 = vpop.f32.mrf.mxu0
        %1133 = vmatprep.mubr.f32.mxu0 0.0
        %1134 = vmatmul.mubr.f32.gmra.mxu0 %v1042
        %v1135 = vpop.f32.mrf.mxu0
        %v1136 = vadd.f32 0.0, %v1135
        %v1137 = vpop.f32.mrf.mxu0
        %1138 = vmatprep.mubr.f32.mxu0 0.0
        %1139 = vmatmul.mubr.f32.gmra.mxu0 %v1045
        %v1140 = vpop.f32.mrf.mxu0
        %v1141 = vadd.f32 0.0, %v1140
        %v1142 = vpop.f32.mrf.mxu0
        %1143 = vmatprep.mubr.f32.mxu0 0.0
        %1144 = vmatmul.mubr.f32.gmra.mxu0 %v1048
        %v1145 = vpop.f32.mrf.mxu0
        %v1146 = vadd.f32 0.0, %v1145
        %v1147 = vpop.f32.mrf.mxu0
        %1148 = vmatprep.mubr.f32.mxu0 0.0
        %1149 = vmatmul.mubr.f32.gmra.mxu0 %v1051
        %v1150 = vpop.f32.mrf.mxu0
        %v1151 = vadd.f32 0.0, %v1150
        %v1152 = vpop.f32.mrf.mxu0
        %1153 = vmatprep.mubr.f32.mxu0 0.0
        %1154 = vmatmul.mubr.f32.gmra.mxu0 %v1054
        %v1155 = vpop.f32.mrf.mxu0
        %v1156 = vadd.f32 0.0, %v1155
        %v1157 = vpop.f32.mrf.mxu0
        %1158 = vmatprep.mubr.f32.mxu0 0.0
        %1159 = vmatmul.mubr.f32.gmra.mxu0 %v1057
        %v1160 = vpop.f32.mrf.mxu0
        %v1161 = vadd.f32 0.0, %v1160
        %v1162 = vpop.f32.mrf.mxu0
        %1163 = vdwg.mxu0
        %v1164 = vsel %vm418, %v1126, 0.0
        %v1165 = vsel %vm418, %v1131, 0.0
        %v1166 = vadd.f32 %v1164, %v1165
        %v1167 = vsel %vm418, %v1136, 0.0
        %v1168 = vadd.f32 %v1166, %v1167
        %v1169 = vsel %vm418, %v1141, 0.0
        %v1170 = vadd.f32 %v1168, %v1169
        %v1171 = vsel %vm418, %v1146, 0.0
        %v1172 = vadd.f32 %v1170, %v1171
        %v1173 = vsel %vm418, %v1151, 0.0
        %v1174 = vadd.f32 %v1172, %v1173
        %v1175 = vsel %vm418, %v1156, 0.0
        %v1176 = vadd.f32 %v1174, %v1175
        %v1177 = vsel %vm418, %v1161, 0.0
        %v1178 = vadd.f32 %v1176, %v1177
        %v1179 = vrot.slane %v1178, 4
        %v1180 = vadd.f32 %v1178, %v1179
        %v1181 = vrot.slane %v1180, 2
        %v1182 = vadd.f32 %v1180, %v1181
        %v1183 = vrot.slane %v1182, 1
        %v1184 = vadd.f32 %v1182, %v1183
        %v1185 = vmul.f32 %v1184, %v1024
        %v1186 = vsub.f32 %v1126, %v1185
        %v1187 = vsub.f32 %v1131, %v1185
        %v1188 = vsub.f32 %v1136, %v1185
        %v1189 = vsub.f32 %v1141, %v1185
        %v1190 = vsub.f32 %v1146, %v1185
        %v1191 = vsub.f32 %v1151, %v1185
        %v1192 = vsub.f32 %v1156, %v1185
        %v1193 = vsub.f32 %v1161, %v1185
        %v1194 = vmul.f32 %v1186, %v1186
        %v1195 = vmul.f32 %v1187, %v1187
        %v1196 = vmul.f32 %v1188, %v1188
        %v1197 = vmul.f32 %v1189, %v1189
        %v1198 = vmul.f32 %v1190, %v1190
        %v1199 = vmul.f32 %v1191, %v1191
        %v1200 = vmul.f32 %v1192, %v1192
        %v1201 = vmul.f32 %v1193, %v1193
        %v1202 = vsel %vm418, %v1194, 0.0
        %v1203 = vsel %vm418, %v1195, 0.0
        %v1204 = vadd.f32 %v1202, %v1203
        %v1205 = vsel %vm418, %v1196, 0.0
        %v1206 = vadd.f32 %v1204, %v1205
        %v1207 = vsel %vm418, %v1197, 0.0
        %v1208 = vadd.f32 %v1206, %v1207
        %v1209 = vsel %vm418, %v1198, 0.0
        %v1210 = vadd.f32 %v1208, %v1209
        %v1211 = vsel %vm418, %v1199, 0.0
        %v1212 = vadd.f32 %v1210, %v1211
        %v1213 = vsel %vm418, %v1200, 0.0
        %v1214 = vadd.f32 %v1212, %v1213
        %v1215 = vsel %vm418, %v1201, 0.0
        %v1216 = vadd.f32 %v1214, %v1215
        %v1217 = vrot.slane %v1216, 4
        %v1218 = vadd.f32 %v1216, %v1217
        %v1219 = vrot.slane %v1218, 2
        %v1220 = vadd.f32 %v1218, %v1219
        %v1221 = vrot.slane %v1220, 1
        %v1222 = vadd.f32 %v1220, %v1221
        %v1223 = vrcp.pop 63.0
        %v1224 = vmul.f32 %v1222, %v1223
        %v1225 = vrsqrt.pop %v1224
        %v1226 = vmul.f32 %v1224, %v1225
        %vm1227 = vcmp.eq.f32.partialorder %v1224, inf
        %v1228 = vsel %vm1227, %v1224, %v1226
        %vm1229 = vcmp.eq.f32.partialorder %v1224, 0.0
        %v1230 = vand.u32 %v1224, 2147483648
        %v1231 = vsel %vm1229, %v1230, %v1228
        %v1232 = vadd.f32 %v1231, 1e-05
        %v1233 = vrcp.pop %v1232
        %v1234 = vmul.f32 %v1186, %v1233
        %v1235 = vmul.f32 %v1187, %v1233
        %v1236 = vmul.f32 %v1188, %v1233
        %v1237 = vmul.f32 %v1189, %v1233
        %v1238 = vmul.f32 %v1190, %v1233
        %v1239 = vmul.f32 %v1191, %v1233
        %v1240 = vmul.f32 %v1192, %v1233
        %v1241 = vmul.f32 %v1193, %v1233
        %v1242 = vld [vmem:[%s5] sm:$0x1]
        %v1244 = vlaneseq
        %v1245 = vshrl.u32 %v1244, 7
        %v1246 = vsub.s32 0, %v1245
        %v1247 = vrot.slane %v1242, %v1246
        %v1249 = vmul.f32 %v1234, %v1247
        %v1250 = vmul.f32 %v1235, %v1247
        %v1251 = vmul.f32 %v1236, %v1247
        %v1252 = vmul.f32 %v1237, %v1247
        %v1253 = vmul.f32 %v1238, %v1247
        %v1254 = vmul.f32 %v1239, %v1247
        %v1255 = vmul.f32 %v1240, %v1247
        %v1256 = vmul.f32 %v1241, %v1247
        %v1257 = vld [vmem:[%s6] sm:$0x1]
        %v1259 = vlaneseq
        %v1260 = vshrl.u32 %v1259, 7
        %v1261 = vsub.s32 0, %v1260
        %v1262 = vrot.slane %v1257, %v1261
        %v1264 = vadd.f32 %v1249, %v1262
        %v1265 = vadd.f32 %v1250, %v1262
        %v1266 = vadd.f32 %v1251, %v1262
        %v1267 = vadd.f32 %v1252, %v1262
        %v1268 = vadd.f32 %v1253, %v1262
        %v1269 = vadd.f32 %v1254, %v1262
        %v1270 = vadd.f32 %v1255, %v1262
        %v1271 = vadd.f32 %v1256, %v1262
        %v1272 = vxor.u32 %v1264, 2147483648
        %v1273 = vxor.u32 %v1265, 2147483648
        %v1274 = vxor.u32 %v1266, 2147483648
        %v1275 = vxor.u32 %v1267, 2147483648
        %v1276 = vxor.u32 %v1268, 2147483648
        %v1277 = vxor.u32 %v1269, 2147483648
        %v1278 = vxor.u32 %v1270, 2147483648
        %v1279 = vxor.u32 %v1271, 2147483648
        %v1280 = vmul.f32 %v1272, 1.442695
        %v1281 = vpow.pop %v1280
        %v1282 = vmul.f32 %v1273, 1.442695
        %v1283 = vpow.pop %v1282
        %v1284 = vmul.f32 %v1274, 1.442695
        %v1285 = vpow.pop %v1284
        %v1286 = vmul.f32 %v1275, 1.442695
        %v1287 = vpow.pop %v1286
        %v1288 = vmul.f32 %v1276, 1.442695
        %v1289 = vpow.pop %v1288
        %v1290 = vmul.f32 %v1277, 1.442695
        %v1291 = vpow.pop %v1290
        %v1292 = vmul.f32 %v1278, 1.442695
        %v1293 = vpow.pop %v1292
        %v1294 = vmul.f32 %v1279, 1.442695
        %v1295 = vpow.pop %v1294
        %v1296 = vadd.f32 %v1281, 1.0
        %v1297 = vadd.f32 %v1283, 1.0
        %v1298 = vadd.f32 %v1285, 1.0
        %v1299 = vadd.f32 %v1287, 1.0
        %v1300 = vadd.f32 %v1289, 1.0
        %v1301 = vadd.f32 %v1291, 1.0
        %v1302 = vadd.f32 %v1293, 1.0
        %v1303 = vadd.f32 %v1295, 1.0
        %v1304 = vrcp.pop %v1296
        %v1305 = vmul.f32 1.0, %v1304
        %v1306 = vrcp.pop %v1297
        %v1307 = vmul.f32 1.0, %v1306
        %v1308 = vrcp.pop %v1298
        %v1309 = vmul.f32 1.0, %v1308
        %v1310 = vrcp.pop %v1299
        %v1311 = vmul.f32 1.0, %v1310
        %v1312 = vrcp.pop %v1300
        %v1313 = vmul.f32 1.0, %v1312
        %v1314 = vrcp.pop %v1301
        %v1315 = vmul.f32 1.0, %v1314
        %v1316 = vrcp.pop %v1302
        %v1317 = vmul.f32 1.0, %v1316
        %v1318 = vrcp.pop %v1303
        %v1319 = vmul.f32 1.0, %v1318
        %v1320 = vld [vmem:[%s4] sm:$0xf]
        %v1322 = vsel %vm418, %v1305, 0
        %v1325 = vsel %vm418, %v1307, 0
        %v1328 = vsel %vm418, %v1309, 0
        %v1331 = vsel %vm418, %v1311, 0
        %v1334 = vsel %vm418, %v1313, 0
        %v1337 = vsel %vm418, %v1315, 0
        %v1340 = vsel %vm418, %v1317, 0
        %v1343 = vsel %vm418, %v1319, 0
        %v1346 = vsel %vm886, %v1320, 0
        %1348 = vmatprep.subr.mxu0 0.0
        %1349 = vmatpush1.msra.mxu0 0.0
        %1350 = vmatprep.subr.mxu0 0.0
        %1351 = vmatpush1.msra.mxu0 0.0
        %1352 = vmatprep.subr.mxu0 0.0
        %1353 = vmatpush1.msra.mxu0 0.0
        %1354 = vmatprep.subr.mxu0 0.0
        %1355 = vmatpush1.msra.mxu0 0.0
        %1356 = vmatprep.subr.mxu0 0.0
        %1357 = vmatpush1.msra.mxu0 0.0
        %1358 = vmatprep.subr.mxu0 0.0
        %1359 = vmatpush1.msra.mxu0 0.0
        %1360 = vmatprep.subr.mxu0 0.0
        %1361 = vmatpush1.msra.mxu0 0.0
        %1362 = vmatprep.subr.mxu0 0.0
        %1363 = vmatpush1.msra.mxu0 0.0
        %1364 = vmatprep.subr.mxu0 0.0
        %1365 = vmatpush1.msra.mxu0 0.0
        %1366 = vmatprep.subr.mxu0 0.0
        %1367 = vmatpush1.msra.mxu0 0.0
        %1368 = vmatprep.subr.mxu0 0.0
        %1369 = vmatpush1.msra.mxu0 0.0
        %1370 = vmatprep.subr.mxu0 0.0
        %1371 = vmatpush1.msra.mxu0 0.0
        %1372 = vmatprep.subr.mxu0 0.0
        %1373 = vmatpush1.msra.mxu0 0.0
        %1374 = vmatprep.subr.mxu0 0.0
        %1375 = vmatpush1.msra.mxu0 0.0
        %1376 = vmatprep.subr.mxu0 0.0
        %1377 = vmatpush1.msra.mxu0 0.0
        %1378 = vmatprep.subr.mxu0 0.0
        %1379 = vmatpush1.msra.mxu0 %v1346
        %1380 = vmatprep.subr.mxu0 0.0
        %1381 = vmatpush2.msra.mxu0 0.0
        %1382 = vmatprep.subr.mxu0 0.0
        %1383 = vmatpush2.msra.mxu0 0.0
        %1384 = vmatprep.subr.mxu0 0.0
        %1385 = vmatpush2.msra.mxu0 0.0
        %1386 = vmatprep.subr.mxu0 0.0
        %1387 = vmatpush2.msra.mxu0 0.0
        %1388 = vmatprep.subr.mxu0 0.0
        %1389 = vmatpush2.msra.mxu0 0.0
        %1390 = vmatprep.subr.mxu0 0.0
        %1391 = vmatpush2.msra.mxu0 0.0
        %1392 = vmatprep.subr.mxu0 0.0
        %1393 = vmatpush2.msra.mxu0 0.0
        %1394 = vmatprep.subr.mxu0 0.0
        %1395 = vmatpush2.msra.mxu0 0.0
        %1396 = vmatprep.subr.mxu0 0.0
        %1397 = vmatpush2.msra.mxu0 0.0
        %1398 = vmatprep.subr.mxu0 0.0
        %1399 = vmatpush2.msra.mxu0 0.0
        %1400 = vmatprep.subr.mxu0 0.0
        %1401 = vmatpush2.msra.mxu0 0.0
        %1402 = vmatprep.subr.mxu0 0.0
        %1403 = vmatpush2.msra.mxu0 0.0
        %1404 = vmatprep.subr.mxu0 0.0
        %1405 = vmatpush2.msra.mxu0 0.0
        %1406 = vmatprep.subr.mxu0 0.0
        %1407 = vmatpush2.msra.mxu0 0.0
        %1408 = vmatprep.subr.mxu0 0.0
        %1409 = vmatpush2.msra.mxu0 0.0
        %1410 = vmatprep.subr.mxu0 0.0
        %1411 = vmatpush2.msra.mxu0 0.0
        %1412 = vmatprep.mubr.f32.mxu0 0.0
        %1413 = vmatmul.mubr.f32.gmra.mxu0 %v1322
        %v1414 = vpop.f32.mrf.mxu0
        %v1415 = vadd.f32 0.0, %v1414
        %v1416 = vpop.f32.mrf.mxu0
        %1417 = vmatprep.mubr.f32.mxu0 0.0
        %1418 = vmatmul.mubr.f32.gmra.mxu0 %v1325
        %v1419 = vpop.f32.mrf.mxu0
        %v1420 = vadd.f32 0.0, %v1419
        %v1421 = vpop.f32.mrf.mxu0
        %1422 = vmatprep.mubr.f32.mxu0 0.0
        %1423 = vmatmul.mubr.f32.gmra.mxu0 %v1328
        %v1424 = vpop.f32.mrf.mxu0
        %v1425 = vadd.f32 0.0, %v1424
        %v1426 = vpop.f32.mrf.mxu0
        %1427 = vmatprep.mubr.f32.mxu0 0.0
        %1428 = vmatmul.mubr.f32.gmra.mxu0 %v1331
        %v1429 = vpop.f32.mrf.mxu0
        %v1430 = vadd.f32 0.0, %v1429
        %v1431 = vpop.f32.mrf.mxu0
        %1432 = vmatprep.mubr.f32.mxu0 0.0
        %1433 = vmatmul.mubr.f32.gmra.mxu0 %v1334
        %v1434 = vpop.f32.mrf.mxu0
        %v1435 = vadd.f32 0.0, %v1434
        %v1436 = vpop.f32.mrf.mxu0
        %1437 = vmatprep.mubr.f32.mxu0 0.0
        %1438 = vmatmul.mubr.f32.gmra.mxu0 %v1337
        %v1439 = vpop.f32.mrf.mxu0
        %v1440 = vadd.f32 0.0, %v1439
        %v1441 = vpop.f32.mrf.mxu0
        %1442 = vmatprep.mubr.f32.mxu0 0.0
        %1443 = vmatmul.mubr.f32.gmra.mxu0 %v1340
        %v1444 = vpop.f32.mrf.mxu0
        %v1445 = vadd.f32 0.0, %v1444
        %v1446 = vpop.f32.mrf.mxu0
        %1447 = vmatprep.mubr.f32.mxu0 0.0
        %1448 = vmatmul.mubr.f32.gmra.mxu0 %v1343
        %v1449 = vpop.f32.mrf.mxu0
        %v1450 = vadd.f32 0.0, %v1449
        %v1451 = vpop.f32.mrf.mxu0
        %1452 = vdwg.mxu0
        %v1453 = vmul.f32 %v995, %v1415
        %v1454 = vmul.f32 %v996, %v1420
        %v1455 = vmul.f32 %v997, %v1425
        %v1456 = vmul.f32 %v998, %v1430
        %v1457 = vmul.f32 %v999, %v1435
        %v1458 = vmul.f32 %v1000, %v1440
        %v1459 = vmul.f32 %v1001, %v1445
        %v1460 = vmul.f32 %v1002, %v1450
        %1461 = vst.msk [vmem:[#allocation3] sm:$0xff] %vm786, 0.0
        %vm1462 = vcmask 58368
        %1463 = vst.msk [vmem:[#allocation3 + $0x8] sm:$0x3] %vm1462, 0.0
        %1464 = vst.msk [vmem:[#allocation3 + $0x10] sm:$0xff] %vm786, 0.0
        %1465 = vst.msk [vmem:[#allocation3 + $0x18] sm:$0x3] %vm1462, 0.0
        %1466 = vst.msk [vmem:[#allocation3 + $0x20] sm:$0xff] %vm786, 0.0
        %1467 = vst.msk [vmem:[#allocation3 + $0x28] sm:$0x3] %vm1462, 0.0
        %1468 = vst.msk [vmem:[#allocation3 + $0x30] sm:$0xff] %vm786, 0.0
        %1469 = vst.msk [vmem:[#allocation3 + $0x38] sm:$0x3] %vm1462, 0.0
        %1470 = vst.msk [vmem:[#allocation3 + $0x40] sm:$0xff] %vm786, 0.0
        %1471 = vst.msk [vmem:[#allocation3 + $0x48] sm:$0x3] %vm1462, 0.0
        %1472 = vst.msk [vmem:[#allocation3 + $0x50] sm:$0xff] %vm786, 0.0
        %1473 = vst.msk [vmem:[#allocation3 + $0x58] sm:$0x3] %vm1462, 0.0
        %1474 = vst.msk [vmem:[#allocation3 + $0x60] sm:$0xff] %vm786, 0.0
        %1475 = vst.msk [vmem:[#allocation3 + $0x68] sm:$0x3] %vm1462, 0.0
        %1476 = vst.msk [vmem:[#allocation3 + $0x70] sm:$0xff] %vm786, 0.0
        %1477 = vst.msk [vmem:[#allocation3 + $0x78] sm:$0x3] %vm1462, 0.0
        %1478 = vst.msk [vmem:[#allocation3 + $0x80] sm:$0xff] %vm786, 0.0
        %1479 = vst.msk [vmem:[#allocation3 + $0x88] sm:$0x3] %vm1462, 0.0
        %1480 = vst.msk [vmem:[#allocation3 + $0x90] sm:$0xff] %vm786, 0.0
        %1481 = vst.msk [vmem:[#allocation3 + $0x98] sm:$0x3] %vm1462, 0.0
        %s1482 = scalar_lea.vmem [#allocation3], 16
        %1483 = vst.msk [vmem:[%s1482 + $0x1] sm:$0xff] %vm786, %v1453
        %1484 = vst.msk [vmem:[%s1482 + $0x11] sm:$0xff] %vm786, %v1454
        %1485 = vst.msk [vmem:[%s1482 + $0x21] sm:$0xff] %vm786, %v1455
        %1486 = vst.msk [vmem:[%s1482 + $0x31] sm:$0xff] %vm786, %v1456
        %1487 = vst.msk [vmem:[%s1482 + $0x41] sm:$0xff] %vm786, %v1457
        %1488 = vst.msk [vmem:[%s1482 + $0x51] sm:$0xff] %vm786, %v1458
        %1489 = vst.msk [vmem:[%s1482 + $0x61] sm:$0xff] %vm786, %v1459
        %1490 = vst.msk [vmem:[%s1482 + $0x71] sm:$0xff] %vm786, %v1460
        %v1491 = vld [vmem:[#allocation3] sm:$0xff]
        %v1492 = vld [vmem:[#allocation3 + $0x10] sm:$0xff]
        %v1493 = vld [vmem:[#allocation3 + $0x20] sm:$0xff]
        %v1494 = vld [vmem:[#allocation3 + $0x30] sm:$0xff]
        %v1495 = vld [vmem:[#allocation3 + $0x40] sm:$0xff]
        %v1496 = vld [vmem:[#allocation3 + $0x50] sm:$0xff]
        %v1497 = vld [vmem:[#allocation3 + $0x60] sm:$0xff]
        %v1498 = vld [vmem:[#allocation3 + $0x70] sm:$0xff]
        %v1499 = vld [vmem:[#allocation3 + $0x1] sm:$0xff]
        %v1500 = vld [vmem:[#allocation3 + $0x11] sm:$0xff]
        %v1501 = vld [vmem:[#allocation3 + $0x21] sm:$0xff]
        %v1502 = vld [vmem:[#allocation3 + $0x31] sm:$0xff]
        %v1503 = vld [vmem:[#allocation3 + $0x41] sm:$0xff]
        %v1504 = vld [vmem:[#allocation3 + $0x51] sm:$0xff]
        %v1505 = vld [vmem:[#allocation3 + $0x61] sm:$0xff]
        %v1506 = vld [vmem:[#allocation3 + $0x71] sm:$0xff]
        %v1507 = vld [vmem:[#allocation3 + $0x2] sm:$0xff]
        %v1508 = vld [vmem:[#allocation3 + $0x12] sm:$0xff]
        %v1509 = vld [vmem:[#allocation3 + $0x22] sm:$0xff]
        %v1510 = vld [vmem:[#allocation3 + $0x32] sm:$0xff]
        %v1511 = vld [vmem:[#allocation3 + $0x42] sm:$0xff]
        %v1512 = vld [vmem:[#allocation3 + $0x52] sm:$0xff]
        %v1513 = vld [vmem:[#allocation3 + $0x62] sm:$0xff]
        %v1514 = vld [vmem:[#allocation3 + $0x72] sm:$0xff]
        %v1515 = vld [vmem:[%s1482] sm:$0xff]
        %v1516 = vld [vmem:[%s1482 + $0x10] sm:$0xff]
        %v1517 = vld [vmem:[%s1482 + $0x20] sm:$0xff]
        %v1518 = vld [vmem:[%s1482 + $0x30] sm:$0xff]
        %v1519 = vld [vmem:[%s1482 + $0x40] sm:$0xff]
        %v1520 = vld [vmem:[%s1482 + $0x50] sm:$0xff]
        %v1521 = vld [vmem:[%s1482 + $0x60] sm:$0xff]
        %v1522 = vld [vmem:[%s1482 + $0x70] sm:$0xff]
        %v1523 = vld [vmem:[%s1482 + $0x1] sm:$0xff]
        %v1524 = vld [vmem:[%s1482 + $0x11] sm:$0xff]
        %v1525 = vld [vmem:[%s1482 + $0x21] sm:$0xff]
        %v1526 = vld [vmem:[%s1482 + $0x31] sm:$0xff]
        %v1527 = vld [vmem:[%s1482 + $0x41] sm:$0xff]
        %v1528 = vld [vmem:[%s1482 + $0x51] sm:$0xff]
        %v1529 = vld [vmem:[%s1482 + $0x61] sm:$0xff]
        %v1530 = vld [vmem:[%s1482 + $0x71] sm:$0xff]
        %v1531 = vld [vmem:[%s1482 + $0x2] sm:$0xff]
        %v1532 = vld [vmem:[%s1482 + $0x12] sm:$0xff]
        %v1533 = vld [vmem:[%s1482 + $0x22] sm:$0xff]
        %v1534 = vld [vmem:[%s1482 + $0x32] sm:$0xff]
        %v1535 = vld [vmem:[%s1482 + $0x42] sm:$0xff]
        %v1536 = vld [vmem:[%s1482 + $0x52] sm:$0xff]
        %v1537 = vld [vmem:[%s1482 + $0x62] sm:$0xff]
        %v1538 = vld [vmem:[%s1482 + $0x72] sm:$0xff]
        %s1539 = scalar_lea.vmem [#allocation3], 32
        %v1540 = vld [vmem:[%s1539] sm:$0xff]
        %v1541 = vld [vmem:[%s1539 + $0x10] sm:$0xff]
        %v1542 = vld [vmem:[%s1539 + $0x20] sm:$0xff]
        %v1543 = vld [vmem:[%s1539 + $0x30] sm:$0xff]
        %v1544 = vld [vmem:[%s1539 + $0x40] sm:$0xff]
        %v1545 = vld [vmem:[%s1539 + $0x50] sm:$0xff]
        %v1546 = vld [vmem:[%s1539 + $0x60] sm:$0xff]
        %v1547 = vld [vmem:[%s1539 + $0x70] sm:$0xff]
        %v1548 = vld [vmem:[%s1539 + $0x1] sm:$0xff]
        %v1549 = vld [vmem:[%s1539 + $0x11] sm:$0xff]
        %v1550 = vld [vmem:[%s1539 + $0x21] sm:$0xff]
        %v1551 = vld [vmem:[%s1539 + $0x31] sm:$0xff]
        %v1552 = vld [vmem:[%s1539 + $0x41] sm:$0xff]
        %v1553 = vld [vmem:[%s1539 + $0x51] sm:$0xff]
        %v1554 = vld [vmem:[%s1539 + $0x61] sm:$0xff]
        %v1555 = vld [vmem:[%s1539 + $0x71] sm:$0xff]
        %v1556 = vld [vmem:[%s1539 + $0x2] sm:$0xff]
        %v1557 = vld [vmem:[%s1539 + $0x12] sm:$0xff]
        %v1558 = vld [vmem:[%s1539 + $0x22] sm:$0xff]
        %v1559 = vld [vmem:[%s1539 + $0x32] sm:$0xff]
        %v1560 = vld [vmem:[%s1539 + $0x42] sm:$0xff]
        %v1561 = vld [vmem:[%s1539 + $0x52] sm:$0xff]
        %v1562 = vld [vmem:[%s1539 + $0x62] sm:$0xff]
        %v1563 = vld [vmem:[%s1539 + $0x72] sm:$0xff]
        %1572 = vrot.lane.b32.xlu0 %v1499, 8
        %v1573 = vpop.permute.xlu0 %1572
        %1574 = vrot.lane.b32.xlu0 %v1500, 8
        %v1575 = vpop.permute.xlu0 %1574
        %1576 = vrot.lane.b32.xlu0 %v1501, 8
        %v1577 = vpop.permute.xlu0 %1576
        %1578 = vrot.lane.b32.xlu0 %v1502, 8
        %v1579 = vpop.permute.xlu0 %1578
        %1580 = vrot.lane.b32.xlu0 %v1503, 8
        %v1581 = vpop.permute.xlu0 %1580
        %1582 = vrot.lane.b32.xlu0 %v1504, 8
        %v1583 = vpop.permute.xlu0 %1582
        %1584 = vrot.lane.b32.xlu0 %v1505, 8
        %v1585 = vpop.permute.xlu0 %1584
        %1586 = vrot.lane.b32.xlu0 %v1506, 8
        %v1587 = vpop.permute.xlu0 %1586
        %1604 = vrot.lane.b32.xlu0 %v1507, 16
        %v1605 = vpop.permute.xlu0 %1604
        %1606 = vrot.lane.b32.xlu0 %v1508, 16
        %v1607 = vpop.permute.xlu0 %1606
        %1608 = vrot.lane.b32.xlu0 %v1509, 16
        %v1609 = vpop.permute.xlu0 %1608
        %1610 = vrot.lane.b32.xlu0 %v1510, 16
        %v1611 = vpop.permute.xlu0 %1610
        %1612 = vrot.lane.b32.xlu0 %v1511, 16
        %v1613 = vpop.permute.xlu0 %1612
        %1614 = vrot.lane.b32.xlu0 %v1512, 16
        %v1615 = vpop.permute.xlu0 %1614
        %1616 = vrot.lane.b32.xlu0 %v1513, 16
        %v1617 = vpop.permute.xlu0 %1616
        %1618 = vrot.lane.b32.xlu0 %v1514, 16
        %v1619 = vpop.permute.xlu0 %1618
        %1636 = vrot.lane.b32.xlu0 %v1515, 24
        %v1637 = vpop.permute.xlu0 %1636
        %1638 = vrot.lane.b32.xlu0 %v1516, 24
        %v1639 = vpop.permute.xlu0 %1638
        %1640 = vrot.lane.b32.xlu0 %v1517, 24
        %v1641 = vpop.permute.xlu0 %1640
        %1642 = vrot.lane.b32.xlu0 %v1518, 24
        %v1643 = vpop.permute.xlu0 %1642
        %1644 = vrot.lane.b32.xlu0 %v1519, 24
        %v1645 = vpop.permute.xlu0 %1644
        %1646 = vrot.lane.b32.xlu0 %v1520, 24
        %v1647 = vpop.permute.xlu0 %1646
        %1648 = vrot.lane.b32.xlu0 %v1521, 24
        %v1649 = vpop.permute.xlu0 %1648
        %1650 = vrot.lane.b32.xlu0 %v1522, 24
        %v1651 = vpop.permute.xlu0 %1650
        %1668 = vrot.lane.b32.xlu0 %v1523, 32
        %v1669 = vpop.permute.xlu0 %1668
        %1670 = vrot.lane.b32.xlu0 %v1524, 32
        %v1671 = vpop.permute.xlu0 %1670
        %1672 = vrot.lane.b32.xlu0 %v1525, 32
        %v1673 = vpop.permute.xlu0 %1672
        %1674 = vrot.lane.b32.xlu0 %v1526, 32
        %v1675 = vpop.permute.xlu0 %1674
        %1676 = vrot.lane.b32.xlu0 %v1527, 32
        %v1677 = vpop.permute.xlu0 %1676
        %1678 = vrot.lane.b32.xlu0 %v1528, 32
        %v1679 = vpop.permute.xlu0 %1678
        %1680 = vrot.lane.b32.xlu0 %v1529, 32
        %v1681 = vpop.permute.xlu0 %1680
        %1682 = vrot.lane.b32.xlu0 %v1530, 32
        %v1683 = vpop.permute.xlu0 %1682
        %1700 = vrot.lane.b32.xlu0 %v1531, 40
        %v1701 = vpop.permute.xlu0 %1700
        %1702 = vrot.lane.b32.xlu0 %v1532, 40
        %v1703 = vpop.permute.xlu0 %1702
        %1704 = vrot.lane.b32.xlu0 %v1533, 40
        %v1705 = vpop.permute.xlu0 %1704
        %1706 = vrot.lane.b32.xlu0 %v1534, 40
        %v1707 = vpop.permute.xlu0 %1706
        %1708 = vrot.lane.b32.xlu0 %v1535, 40
        %v1709 = vpop.permute.xlu0 %1708
        %1710 = vrot.lane.b32.xlu0 %v1536, 40
        %v1711 = vpop.permute.xlu0 %1710
        %1712 = vrot.lane.b32.xlu0 %v1537, 40
        %v1713 = vpop.permute.xlu0 %1712
        %1714 = vrot.lane.b32.xlu0 %v1538, 40
        %v1715 = vpop.permute.xlu0 %1714
        %1732 = vrot.lane.b32.xlu0 %v1540, 48
        %v1733 = vpop.permute.xlu0 %1732
        %1734 = vrot.lane.b32.xlu0 %v1541, 48
        %v1735 = vpop.permute.xlu0 %1734
        %1736 = vrot.lane.b32.xlu0 %v1542, 48
        %v1737 = vpop.permute.xlu0 %1736
        %1738 = vrot.lane.b32.xlu0 %v1543, 48
        %v1739 = vpop.permute.xlu0 %1738
        %1740 = vrot.lane.b32.xlu0 %v1544, 48
        %v1741 = vpop.permute.xlu0 %1740
        %1742 = vrot.lane.b32.xlu0 %v1545, 48
        %v1743 = vpop.permute.xlu0 %1742
        %1744 = vrot.lane.b32.xlu0 %v1546, 48
        %v1745 = vpop.permute.xlu0 %1744
        %1746 = vrot.lane.b32.xlu0 %v1547, 48
        %v1747 = vpop.permute.xlu0 %1746
        %1764 = vrot.lane.b32.xlu0 %v1548, 56
        %v1765 = vpop.permute.xlu0 %1764
        %1766 = vrot.lane.b32.xlu0 %v1549, 56
        %v1767 = vpop.permute.xlu0 %1766
        %1768 = vrot.lane.b32.xlu0 %v1550, 56
        %v1769 = vpop.permute.xlu0 %1768
        %1770 = vrot.lane.b32.xlu0 %v1551, 56
        %v1771 = vpop.permute.xlu0 %1770
        %1772 = vrot.lane.b32.xlu0 %v1552, 56
        %v1773 = vpop.permute.xlu0 %1772
        %1774 = vrot.lane.b32.xlu0 %v1553, 56
        %v1775 = vpop.permute.xlu0 %1774
        %1776 = vrot.lane.b32.xlu0 %v1554, 56
        %v1777 = vpop.permute.xlu0 %1776
        %1778 = vrot.lane.b32.xlu0 %v1555, 56
        %v1779 = vpop.permute.xlu0 %1778
        %1796 = vrot.lane.b32.xlu0 %v1556, 64
        %v1797 = vpop.permute.xlu0 %1796
        %1798 = vrot.lane.b32.xlu0 %v1557, 64
        %v1799 = vpop.permute.xlu0 %1798
        %1800 = vrot.lane.b32.xlu0 %v1558, 64
        %v1801 = vpop.permute.xlu0 %1800
        %1802 = vrot.lane.b32.xlu0 %v1559, 64
        %v1803 = vpop.permute.xlu0 %1802
        %1804 = vrot.lane.b32.xlu0 %v1560, 64
        %v1805 = vpop.permute.xlu0 %1804
        %1806 = vrot.lane.b32.xlu0 %v1561, 64
        %v1807 = vpop.permute.xlu0 %1806
        %1808 = vrot.lane.b32.xlu0 %v1562, 64
        %v1809 = vpop.permute.xlu0 %1808
        %1810 = vrot.lane.b32.xlu0 %v1563, 64
        %v1811 = vpop.permute.xlu0 %1810
        %v1820 = vsel %vm786, %v1491, %v1573
        %v1821 = vsel %vm786, %v1492, %v1575
        %v1822 = vsel %vm786, %v1493, %v1577
        %v1823 = vsel %vm786, %v1494, %v1579
        %v1824 = vsel %vm786, %v1495, %v1581
        %v1825 = vsel %vm786, %v1496, %v1583
        %v1826 = vsel %vm786, %v1497, %v1585
        %v1827 = vsel %vm786, %v1498, %v1587
        %v1828 = vsel %vm804, %v1820, %v1605
        %v1829 = vsel %vm804, %v1821, %v1607
        %v1830 = vsel %vm804, %v1822, %v1609
        %v1831 = vsel %vm804, %v1823, %v1611
        %v1832 = vsel %vm804, %v1824, %v1613
        %v1833 = vsel %vm804, %v1825, %v1615
        %v1834 = vsel %vm804, %v1826, %v1617
        %v1835 = vsel %vm804, %v1827, %v1619
        %v1836 = vsel %vm822, %v1828, %v1637
        %v1837 = vsel %vm822, %v1829, %v1639
        %v1838 = vsel %vm822, %v1830, %v1641
        %v1839 = vsel %vm822, %v1831, %v1643
        %v1840 = vsel %vm822, %v1832, %v1645
        %v1841 = vsel %vm822, %v1833, %v1647
        %v1842 = vsel %vm822, %v1834, %v1649
        %v1843 = vsel %vm822, %v1835, %v1651
        %v1844 = vsel %vm840, %v1836, %v1669
        %v1845 = vsel %vm840, %v1837, %v1671
        %v1846 = vsel %vm840, %v1838, %v1673
        %v1847 = vsel %vm840, %v1839, %v1675
        %v1848 = vsel %vm840, %v1840, %v1677
        %v1849 = vsel %vm840, %v1841, %v1679
        %v1850 = vsel %vm840, %v1842, %v1681
        %v1851 = vsel %vm840, %v1843, %v1683
        %vm1852 = vcmask 326656
        %v1853 = vsel %vm1852, %v1844, %v1701
        %v1854 = vsel %vm1852, %v1845, %v1703
        %v1855 = vsel %vm1852, %v1846, %v1705
        %v1856 = vsel %vm1852, %v1847, %v1707
        %v1857 = vsel %vm1852, %v1848, %v1709
        %v1858 = vsel %vm1852, %v1849, %v1711
        %v1859 = vsel %vm1852, %v1850, %v1713
        %v1860 = vsel %vm1852, %v1851, %v1715
        %vm1861 = vcmask 392192
        %v1862 = vsel %vm1861, %v1853, %v1733
        %v1863 = vsel %vm1861, %v1854, %v1735
        %v1864 = vsel %vm1861, %v1855, %v1737
        %v1865 = vsel %vm1861, %v1856, %v1739
        %v1866 = vsel %vm1861, %v1857, %v1741
        %v1867 = vsel %vm1861, %v1858, %v1743
        %v1868 = vsel %vm1861, %v1859, %v1745
        %v1869 = vsel %vm1861, %v1860, %v1747
        %vm1870 = vcmask 457728
        %v1871 = vsel %vm1870, %v1862, %v1765
        %v1872 = vsel %vm1870, %v1863, %v1767
        %v1873 = vsel %vm1870, %v1864, %v1769
        %v1874 = vsel %vm1870, %v1865, %v1771
        %v1875 = vsel %vm1870, %v1866, %v1773
        %v1876 = vsel %vm1870, %v1867, %v1775
        %v1877 = vsel %vm1870, %v1868, %v1777
        %v1878 = vsel %vm1870, %v1869, %v1779
        %vm1879 = vcmask 523264
        %v1880 = vsel %vm1879, %v1871, %v1797
        %v1881 = vsel %vm1879, %v1872, %v1799
        %v1882 = vsel %vm1879, %v1873, %v1801
        %v1883 = vsel %vm1879, %v1874, %v1803
        %v1884 = vsel %vm1879, %v1875, %v1805
        %v1885 = vsel %vm1879, %v1876, %v1807
        %v1886 = vsel %vm1879, %v1877, %v1809
        %v1887 = vsel %vm1879, %v1878, %v1811
        %v1888 = vld [vmem:[%s7] sm:$0xff]
        %v1889 = vld [vmem:[%s7 + $0x8] sm:$0xff]
        %v1890 = vld [vmem:[%s7 + $0x10] sm:$0xff]
        %v1891 = vld [vmem:[%s7 + $0x18] sm:$0xff]
        %v1892 = vld [vmem:[%s7 + $0x20] sm:$0xff]
        %v1893 = vld [vmem:[%s7 + $0x28] sm:$0xff]
        %v1894 = vld [vmem:[%s7 + $0x30] sm:$0xff]
        %v1895 = vld [vmem:[%s7 + $0x38] sm:$0xff]
        %v1896 = vld [vmem:[%s7 + $0x40] sm:$0xff]
        %v1897 = vld [vmem:[%s8] sm:$0x1]
        %v1899 = vlaneseq
        %v1900 = vshrl.u32 %v1899, 7
        %v1901 = vsub.s32 0, %v1900
        %v1902 = vrot.slane %v1897, %v1901
        %vm1904 = vcmask 588800
        %v1906 = vsel %vm1904, %v1880, 0
        %v1909 = vsel %vm1904, %v1881, 0
        %v1912 = vsel %vm1904, %v1882, 0
        %v1915 = vsel %vm1904, %v1883, 0
        %v1918 = vsel %vm1904, %v1884, 0
        %v1921 = vsel %vm1904, %v1885, 0
        %v1924 = vsel %vm1904, %v1886, 0
        %v1927 = vsel %vm1904, %v1887, 0
        %1929 = vmatprep.subr.mxu0 0.0
        %1930 = vmatpush1.msra.mxu0 0.0
        %1931 = vmatprep.subr.mxu0 0.0
        %1932 = vmatpush1.msra.mxu0 0.0
        %1933 = vmatprep.subr.mxu0 0.0
        %1934 = vmatpush1.msra.mxu0 0.0
        %1935 = vmatprep.subr.mxu0 0.0
        %1936 = vmatpush1.msra.mxu0 0.0
        %1937 = vmatprep.subr.mxu0 0.0
        %1938 = vmatpush1.msra.mxu0 0.0
        %1939 = vmatprep.subr.mxu0 0.0
        %1940 = vmatpush1.msra.mxu0 0.0
        %1941 = vmatprep.subr.mxu0 0.0
        %1942 = vmatpush1.msra.mxu0 0.0
        %1943 = vmatprep.subr.mxu0 0.0
        %1944 = vmatpush1.msra.mxu0 %v1896
        %1945 = vmatprep.subr.mxu0 0.0
        %1946 = vmatpush1.msra.mxu0 %v1895
        %1947 = vmatprep.subr.mxu0 0.0
        %1948 = vmatpush1.msra.mxu0 %v1894
        %1949 = vmatprep.subr.mxu0 0.0
        %1950 = vmatpush1.msra.mxu0 %v1893
        %1951 = vmatprep.subr.mxu0 0.0
        %1952 = vmatpush1.msra.mxu0 %v1892
        %1953 = vmatprep.subr.mxu0 0.0
        %1954 = vmatpush1.msra.mxu0 %v1891
        %1955 = vmatprep.subr.mxu0 0.0
        %1956 = vmatpush1.msra.mxu0 %v1890
        %1957 = vmatprep.subr.mxu0 0.0
        %1958 = vmatpush1.msra.mxu0 %v1889
        %1959 = vmatprep.subr.mxu0 0.0
        %1960 = vmatpush1.msra.mxu0 %v1888
        %1961 = vmatprep.subr.mxu0 0.0
        %1962 = vmatpush2.msra.mxu0 0.0
        %1963 = vmatprep.subr.mxu0 0.0
        %1964 = vmatpush2.msra.mxu0 0.0
        %1965 = vmatprep.subr.mxu0 0.0
        %1966 = vmatpush2.msra.mxu0 0.0
        %1967 = vmatprep.subr.mxu0 0.0
        %1968 = vmatpush2.msra.mxu0 0.0
        %1969 = vmatprep.subr.mxu0 0.0
        %1970 = vmatpush2.msra.mxu0 0.0
        %1971 = vmatprep.subr.mxu0 0.0
        %1972 = vmatpush2.msra.mxu0 0.0
        %1973 = vmatprep.subr.mxu0 0.0
        %1974 = vmatpush2.msra.mxu0 0.0
        %1975 = vmatprep.subr.mxu0 0.0
        %1976 = vmatpush2.msra.mxu0 0.0
        %1977 = vmatprep.subr.mxu0 0.0
        %1978 = vmatpush2.msra.mxu0 0.0
        %1979 = vmatprep.subr.mxu0 0.0
        %1980 = vmatpush2.msra.mxu0 0.0
        %1981 = vmatprep.subr.mxu0 0.0
        %1982 = vmatpush2.msra.mxu0 0.0
        %1983 = vmatprep.subr.mxu0 0.0
        %1984 = vmatpush2.msra.mxu0 0.0
        %1985 = vmatprep.subr.mxu0 0.0
        %1986 = vmatpush2.msra.mxu0 0.0
        %1987 = vmatprep.subr.mxu0 0.0
        %1988 = vmatpush2.msra.mxu0 0.0
        %1989 = vmatprep.subr.mxu0 0.0
        %1990 = vmatpush2.msra.mxu0 0.0
        %1991 = vmatprep.subr.mxu0 0.0
        %1992 = vmatpush2.msra.mxu0 0.0
        %1993 = vmatprep.mubr.f32.mxu0 0.0
        %1994 = vmatmul.mubr.f32.gmra.mxu0 %v1906
        %v1995 = vpop.f32.mrf.mxu0
        %v1996 = vadd.f32 %v1902, %v1995
        %v1997 = vpop.f32.mrf.mxu0
        %1998 = vmatprep.mubr.f32.mxu0 0.0
        %1999 = vmatmul.mubr.f32.gmra.mxu0 %v1909
        %v2000 = vpop.f32.mrf.mxu0
        %v2001 = vadd.f32 %v1902, %v2000
        %v2002 = vpop.f32.mrf.mxu0
        %2003 = vmatprep.mubr.f32.mxu0 0.0
        %2004 = vmatmul.mubr.f32.gmra.mxu0 %v1912
        %v2005 = vpop.f32.mrf.mxu0
        %v2006 = vadd.f32 %v1902, %v2005
        %v2007 = vpop.f32.mrf.mxu0
        %2008 = vmatprep.mubr.f32.mxu0 0.0
        %2009 = vmatmul.mubr.f32.gmra.mxu0 %v1915
        %v2010 = vpop.f32.mrf.mxu0
        %v2011 = vadd.f32 %v1902, %v2010
        %v2012 = vpop.f32.mrf.mxu0
        %2013 = vmatprep.mubr.f32.mxu0 0.0
        %2014 = vmatmul.mubr.f32.gmra.mxu0 %v1918
        %v2015 = vpop.f32.mrf.mxu0
        %v2016 = vadd.f32 %v1902, %v2015
        %v2017 = vpop.f32.mrf.mxu0
        %2018 = vmatprep.mubr.f32.mxu0 0.0
        %2019 = vmatmul.mubr.f32.gmra.mxu0 %v1921
        %v2020 = vpop.f32.mrf.mxu0
        %v2021 = vadd.f32 %v1902, %v2020
        %v2022 = vpop.f32.mrf.mxu0
        %2023 = vmatprep.mubr.f32.mxu0 0.0
        %2024 = vmatmul.mubr.f32.gmra.mxu0 %v1924
        %v2025 = vpop.f32.mrf.mxu0
        %v2026 = vadd.f32 %v1902, %v2025
        %v2027 = vpop.f32.mrf.mxu0
        %2028 = vmatprep.mubr.f32.mxu0 0.0
        %2029 = vmatmul.mubr.f32.gmra.mxu0 %v1927
        %v2030 = vpop.f32.mrf.mxu0
        %v2031 = vadd.f32 %v1902, %v2030
        %v2032 = vpop.f32.mrf.mxu0
        %2033 = vdwg.mxu0
        %v2034 = vmax.f32 %v1996, 0.0
        %v2035 = vmax.f32 %v2001, 0.0
        %v2036 = vmax.f32 %v2006, 0.0
        %v2037 = vmax.f32 %v2011, 0.0
        %v2038 = vmax.f32 %v2016, 0.0
        %v2039 = vmax.f32 %v2021, 0.0
        %v2040 = vmax.f32 %v2026, 0.0
        %v2041 = vmax.f32 %v2031, 0.0
        %2042 = vst.msk [vmem:[%s352] sm:$0xff] %vm786, %v2034
        %2043 = vst.msk [vmem:[%s352 + $0x8] sm:$0xff] %vm786, %v2035
        %2044 = vst.msk [vmem:[%s352 + $0x10] sm:$0xff] %vm786, %v2036
        %2045 = vst.msk [vmem:[%s352 + $0x18] sm:$0xff] %vm786, %v2037
        %2046 = vst.msk [vmem:[%s352 + $0x20] sm:$0xff] %vm786, %v2038
        %2047 = vst.msk [vmem:[%s352 + $0x28] sm:$0xff] %vm786, %v2039
        %2048 = vst.msk [vmem:[%s352 + $0x30] sm:$0xff] %vm786, %v2040
        %2049 = vst.msk [vmem:[%s352 + $0x38] sm:$0xff] %vm786, %v2041
        %p2050 = scmp.lt.s32.totalorder %s23, 1
        %s2051 = scalar_select %p2050, %s23, 1
        %s2052 = smul.addr %s2051, 8
        %s2053 = smul.addr %s2052, 8
        %s2054 = scalar_lea.vmem %s9, %s2053
        // Predicated region
        $region61: #{tpu_custom_call.1} parent=55 // pred_check
          %p2055 = pneg %p235
        $region62: #{tpu_custom_call.1} parent=55 // pred_check_branch
          %2057 = sbr.rel (%p2055) target = $region64
        $region63: #{tpu_custom_call.1} parent=55 // pred_region
          _
        $region64: #{tpu_custom_call.1} parent=55 // pred_fallthru
          _
      $region56: #{tpu_custom_call.1} parent=5 // pred_fallthru
        _
      %p2058 = scmp.le.s32.totalorder 2, %s18
      // Predicated region
      $region65: #{tpu_custom_call.1} parent=5 // pred_check
        %p2059 = pneg %p2058
      $region66: #{tpu_custom_call.1} parent=5 // pred_check_branch
        %2061 = sbr.rel (%p2059) target = $region68
      $region67: #{tpu_custom_call.1} parent=5 // pred_region
        %s2062 = ssub.s32 %s18, 2
        // Predicated region
        $region69: #{tpu_custom_call.1} parent=67 // pred_check
          %p2063 = pneg %p241
        $region70: #{tpu_custom_call.1} parent=67 // pred_check_branch
          %2065 = sbr.rel (%p2063) target = $region72
        $region71: #{tpu_custom_call.1} parent=67 // pred_region
          %p2066 = scmp.lt.s32.totalorder %s24, 1
          %s2067 = scalar_select %p2066, %s24, 1
          %s2068 = smul.addr %s2067, 8
          %s2069 = smul.addr %s2068, 8
          %s2070 = scalar_lea.vmem %s9, %s2069
        $region72: #{tpu_custom_call.1} parent=67 // pred_fallthru
          _
      $region68: #{tpu_custom_call.1} parent=5 // pred_fallthru
        _
    $region6: #{tpu_custom_call.1} parent=1 // loop_footer
      %s22 = sadd.s32 1, %s18
    $region7: #{tpu_custom_call.1} parent=1 // loop_footer_branch
      %17 = sbr.rel target = $region3
    $region8: #{tpu_custom_call.1} parent=1 // loop_exit
      _
    %2071 = vsyncpa [#allocation5], 1
    %s2072 = scalar_lea.sflag [#allocation5], 1
    %2073 = vsyncpa %s2072, 1

</llo_original>
